<compile_context>
chip_gen: v5e
topology: v5e:2x2
jax: 0.10.0
libtpu: 0.0.40
codegen_flags: <defaults>
</compile_context>

<pallas_src>
import functools

import jax
import jax.numpy as jnp
from jax.experimental import pallas as pl
from jax.experimental.pallas import tpu as pltpu

HIDDEN = 256


def _full_spec(shape):
    # whole-array block (grid has a single point)
    return pl.BlockSpec(shape, lambda i: (0,) * len(shape))


def _kl_mean(mq, vq, mp, vp):
    # faithful to torch source:
    #   ((mq - mp)^2 + vq^2)/2 * (vp + 1e-8)^2 + log((vp + 1e-16)/(vq + 1e-16))
    kl = ((mq - mp) ** 2 + vq ** 2) * 0.5 * (vp + 1e-8) ** 2 \
         + jnp.log((vp + 1e-16) / (vq + 1e-16))
    return jnp.mean(kl)


# ---------------------------------------------------------------------------
# Single fused kernel: 4 towers + reparameterize + KL (scalar out in SMEM)
# ---------------------------------------------------------------------------
def _fused_vae_kernel(d_in,
                      uid_x_ref, nid_x_ref, ufe_x_ref, nfe_x_ref,
                      eps_u_ref, eps_n_ref,
                      uid_w1_ref, uid_b1_ref, uid_w2_ref, uid_b2_ref,
                      nid_w1_ref, nid_b1_ref, nid_w2_ref, nid_b2_ref,
                      ufe_w1_ref, ufe_b1_ref, ufe_w2_ref, ufe_b2_ref,
                      nfe_w1_ref, nfe_b1_ref, nfe_w2_ref, nfe_b2_ref,
                      uid_z_ref, nid_z_ref, kl_ref):

    def tower(x, w1_ref, b1_ref, w2_ref, b2_ref):
        # Linear1 (with folded BatchNorm) -> ReLU -> [Dropout=id] -> Linear2 -> Sigmoid
        h = jnp.dot(x, w1_ref[...], preferred_element_type=jnp.float32) + b1_ref[...]
        h = jnp.maximum(h, 0.0)
        y = jnp.dot(h, w2_ref[...], preferred_element_type=jnp.float32) + b2_ref[...]
        y = jax.nn.sigmoid(y)
        # chunk(2, -1): first half = mean, second half = var  (stays in VMEM)
        return y[:, :d_in], y[:, d_in:]

    uid_mean, uid_var = tower(uid_x_ref[...], uid_w1_ref, uid_b1_ref, uid_w2_ref, uid_b2_ref)
    nid_mean, nid_var = tower(nid_x_ref[...], nid_w1_ref, nid_b1_ref, nid_w2_ref, nid_b2_ref)
    ufe_mean, ufe_var = tower(ufe_x_ref[...], ufe_w1_ref, ufe_b1_ref, ufe_w2_ref, ufe_b2_ref)
    nfe_mean, nfe_var = tower(nfe_x_ref[...], nfe_w1_ref, nfe_b1_ref, nfe_w2_ref, nfe_b2_ref)

    # reparameterize uses var BEFORE abs (exactly as the torch code does)
    uid_z_ref[...] = uid_mean + uid_var * eps_u_ref[...]
    nid_z_ref[...] = nid_mean + nid_var * eps_n_ref[...]

    # abs() applied after reparameterize, before the KL terms
    uid_var_a = jnp.abs(uid_var)
    nid_var_a = jnp.abs(nid_var)
    ufe_var_a = jnp.abs(ufe_var)
    nfe_var_a = jnp.abs(nfe_var)

    kl = (_kl_mean(uid_mean, uid_var_a, ufe_mean, ufe_var_a)
          + _kl_mean(nid_mean, nid_var_a, nfe_mean, nfe_var_a)
          + _kl_mean(ufe_mean, ufe_var_a, 0.0, 1.0)    # standard-normal prior,
          + _kl_mean(nfe_mean, nfe_var_a, 0.0, 1.0))   # no zeros/ones arrays
    kl_ref[0, 0] = kl


# ---------------------------------------------------------------------------
# Parameter init (deterministic, synthetic) with BatchNorm folded into Linear1
# ---------------------------------------------------------------------------
def init_tower(key, d_in):
    k = jax.random.split(key, 8)
    w1 = 0.05 * jax.random.normal(k[0], (d_in, HIDDEN), jnp.float32)
    b1 = 0.05 * jax.random.normal(k[1], (HIDDEN,), jnp.float32)
    gamma = 1.0 + 0.1 * jax.random.normal(k[2], (HIDDEN,), jnp.float32)
    beta = 0.1 * jax.random.normal(k[3], (HIDDEN,), jnp.float32)
    rmean = 0.1 * jax.random.normal(k[4], (HIDDEN,), jnp.float32)
    rvar = 1.0 + 0.1 * jax.random.uniform(k[5], (HIDDEN,), jnp.float32)
    w2 = 0.05 * jax.random.normal(k[6], (HIDDEN, 2 * d_in), jnp.float32)
    b2 = 0.05 * jax.random.normal(k[7], (2 * d_in,), jnp.float32)
    # fold BatchNorm1d (eval / running-stats mode):  bn(y) = y*scale + shift
    scale = gamma / jnp.sqrt(rvar + 1e-5)
    w1f = w1 * scale[None, :]
    b1f = (b1 - rmean) * scale + beta
    return (w1f, b1f[None, :], w2, b2[None, :])


# ---------------------------------------------------------------------------
# Full forward (matches Vae_Tower.forward / dual_vae_net semantics)
# ---------------------------------------------------------------------------
def vae_tower_forward(params, newsId_rep, userId_rep, news_rep, user_rep, eps_key):
    B, S, D = newsId_rep.shape

    user_id_x = userId_rep.reshape(-1, D)        # (B, D)
    news_id_x = newsId_rep.reshape(-1, D)        # (B*S, D)
    user_fea_x = user_rep.reshape(B, D)          # user_rep.squeeze() -> (B, D)
    news_fea_x = news_rep.reshape(-1, D)         # (B*S, D)

    k1, k2 = jax.random.split(eps_key)
    eps_u = jax.random.normal(k1, (B, D), jnp.float32)
    eps_n = jax.random.normal(k2, (B * S, D), jnp.float32)

    uid_w1, uid_b1, uid_w2, uid_b2 = params["user_id"]
    nid_w1, nid_b1, nid_w2, nid_b2 = params["news_id"]
    ufe_w1, ufe_b1, ufe_w2, ufe_b2 = params["user_att"]
    nfe_w1, nfe_b1, nfe_w2, nfe_b2 = params["news_att"]

    args = (user_id_x, news_id_x, user_fea_x, news_fea_x, eps_u, eps_n,
            uid_w1, uid_b1, uid_w2, uid_b2,
            nid_w1, nid_b1, nid_w2, nid_b2,
            ufe_w1, ufe_b1, ufe_w2, ufe_b2,
            nfe_w1, nfe_b1, nfe_w2, nfe_b2)

    in_specs = [_full_spec(a.shape) for a in args]
    out_shape = (
        jax.ShapeDtypeStruct((B, D), jnp.float32),        # userIdZ
        jax.ShapeDtypeStruct((B * S, D), jnp.float32),    # newsIdZ (flat rows)
        jax.ShapeDtypeStruct((1, 1), jnp.float32),        # kl_loss (scalar)
    )
    out_specs = (
        _full_spec((B, D)),
        _full_spec((B * S, D)),
        pl.BlockSpec(memory_space=pltpu.MemorySpace.SMEM),
    )

    # Advisory cost estimate for XLA scheduling around the custom call.
    rows_u, rows_n = B, B * S
    per_tower = lambda r: 2 * r * D * HIDDEN + 2 * r * HIDDEN * (2 * D)
    flops = 2 * per_tower(rows_u) + 2 * per_tower(rows_n)
    transcendentals = 4 * (rows_u + rows_n) * (2 * D)     # sigmoid + log, rough
    bytes_accessed = int(sum(a.size * a.dtype.itemsize for a in args)
                         + 4 * (B * D + B * S * D + 1))

    userIdZ, newsIdZ_flat, kl = pl.pallas_call(
        functools.partial(_fused_vae_kernel, D),
        grid=(1,),
        out_shape=out_shape,
        in_specs=in_specs,
        out_specs=out_specs,
        # eps buffers are reused as the z output buffers (same shape/dtype)
        input_output_aliases={4: 0, 5: 1},
        compiler_params=pltpu.CompilerParams(
            dimension_semantics=("arbitrary",)),
        cost_estimate=pl.CostEstimate(flops=flops,
                                      transcendentals=transcendentals,
                                      bytes_accessed=bytes_accessed),
    )(*args)

    kl_loss = kl[0, 0]
    return userIdZ, newsIdZ_flat.reshape(B, S, D), kl_loss


if __name__ == "__main__":
    key = jax.random.PRNGKey(0)
    B, S = 2, 8                       # batch, sample_size
    att_dim, att_heads = 8, 4
    D = att_dim * att_heads           # embedding_origin_dim = 32

    keys = jax.random.split(key, 9)
    params = {
        "user_att": init_tower(keys[0], D),
        "user_id": init_tower(keys[1], D),
        "news_att": init_tower(keys[2], D),
        "news_id": init_tower(keys[3], D),
    }

    newsId_rep = jax.random.normal(keys[4], (B, S, D), jnp.float32)
    userId_rep = jax.random.normal(keys[5], (B, D), jnp.float32)
    news_rep = jax.random.normal(keys[6], (B, S, D), jnp.float32)
    user_rep = jax.random.normal(keys[7], (B, 1, D), jnp.float32)

    fwd = jax.jit(vae_tower_forward)
    userIdZ, newsIdZ, kl_loss = fwd(
        params, newsId_rep, userId_rep, news_rep, user_rep, keys[8])
    jax.block_until_ready((userIdZ, newsIdZ, kl_loss))

    assert userIdZ.shape == (B, D)
    assert newsIdZ.shape == (B, S, D)
    assert kl_loss.shape == ()
    assert bool(jnp.isfinite(kl_loss))
    print("KERNEL_OK")
</pallas_src>

<mosaic_0001>
module attributes {stable_mosaic.version = 11 : i64} {
  func.func @_fused_vae_kernel(%arg0: i32, %arg1: memref<2x32xf32, #tpu.memory_space<vmem>>, %arg2: memref<16x32xf32, #tpu.memory_space<vmem>>, %arg3: memref<2x32xf32, #tpu.memory_space<vmem>>, %arg4: memref<16x32xf32, #tpu.memory_space<vmem>>, %arg5: memref<2x32xf32, #tpu.memory_space<vmem>>, %arg6: memref<16x32xf32, #tpu.memory_space<vmem>>, %arg7: memref<32x256xf32, #tpu.memory_space<vmem>>, %arg8: memref<1x256xf32, #tpu.memory_space<vmem>>, %arg9: memref<256x64xf32, #tpu.memory_space<vmem>>, %arg10: memref<1x64xf32, #tpu.memory_space<vmem>>, %arg11: memref<32x256xf32, #tpu.memory_space<vmem>>, %arg12: memref<1x256xf32, #tpu.memory_space<vmem>>, %arg13: memref<256x64xf32, #tpu.memory_space<vmem>>, %arg14: memref<1x64xf32, #tpu.memory_space<vmem>>, %arg15: memref<32x256xf32, #tpu.memory_space<vmem>>, %arg16: memref<1x256xf32, #tpu.memory_space<vmem>>, %arg17: memref<256x64xf32, #tpu.memory_space<vmem>>, %arg18: memref<1x64xf32, #tpu.memory_space<vmem>>, %arg19: memref<32x256xf32, #tpu.memory_space<vmem>>, %arg20: memref<1x256xf32, #tpu.memory_space<vmem>>, %arg21: memref<256x64xf32, #tpu.memory_space<vmem>>, %arg22: memref<1x64xf32, #tpu.memory_space<vmem>>, %arg23: memref<2x32xf32, #tpu.memory_space<vmem>>, %arg24: memref<16x32xf32, #tpu.memory_space<vmem>>, %arg25: memref<1x1xf32, #tpu.memory_space<smem>>) attributes {dimension_semantics = [#tpu.dimension_semantics<arbitrary>], iteration_bounds = array<i64: 1>, scalar_prefetch = 0 : i64, scratch_operands = 0 : i64, tpu.core_type = #tpu.core_type<tc>, window_params = [{pipeline_mode = #tpu.pipeline_mode<synchronous>, transform_indices = @transform_0, window_bounds = array<i64: 2, 32>}, {pipeline_mode = #tpu.pipeline_mode<synchronous>, transform_indices = @transform_1, window_bounds = array<i64: 16, 32>}, {pipeline_mode = #tpu.pipeline_mode<synchronous>, transform_indices = @transform_2, window_bounds = array<i64: 2, 32>}, {pipeline_mode = #tpu.pipeline_mode<synchronous>, transform_indices = @transform_3, window_bounds = array<i64: 16, 32>}, {pipeline_mode = #tpu.pipeline_mode<synchronous>, transform_indices = @transform_4, window_bounds = array<i64: 2, 32>}, {pipeline_mode = #tpu.pipeline_mode<synchronous>, transform_indices = @transform_5, window_bounds = array<i64: 16, 32>}, {pipeline_mode = #tpu.pipeline_mode<synchronous>, transform_indices = @transform_6, window_bounds = array<i64: 32, 256>}, {pipeline_mode = #tpu.pipeline_mode<synchronous>, transform_indices = @transform_7, window_bounds = array<i64: 1, 256>}, {pipeline_mode = #tpu.pipeline_mode<synchronous>, transform_indices = @transform_8, window_bounds = array<i64: 256, 64>}, {pipeline_mode = #tpu.pipeline_mode<synchronous>, transform_indices = @transform_9, window_bounds = array<i64: 1, 64>}, {pipeline_mode = #tpu.pipeline_mode<synchronous>, transform_indices = @transform_10, window_bounds = array<i64: 32, 256>}, {pipeline_mode = #tpu.pipeline_mode<synchronous>, transform_indices = @transform_11, window_bounds = array<i64: 1, 256>}, {pipeline_mode = #tpu.pipeline_mode<synchronous>, transform_indices = @transform_12, window_bounds = array<i64: 256, 64>}, {pipeline_mode = #tpu.pipeline_mode<synchronous>, transform_indices = @transform_13, window_bounds = array<i64: 1, 64>}, {pipeline_mode = #tpu.pipeline_mode<synchronous>, transform_indices = @transform_14, window_bounds = array<i64: 32, 256>}, {pipeline_mode = #tpu.pipeline_mode<synchronous>, transform_indices = @transform_15, window_bounds = array<i64: 1, 256>}, {pipeline_mode = #tpu.pipeline_mode<synchronous>, transform_indices = @transform_16, window_bounds = array<i64: 256, 64>}, {pipeline_mode = #tpu.pipeline_mode<synchronous>, transform_indices = @transform_17, window_bounds = array<i64: 1, 64>}, {pipeline_mode = #tpu.pipeline_mode<synchronous>, transform_indices = @transform_18, window_bounds = array<i64: 32, 256>}, {pipeline_mode = #tpu.pipeline_mode<synchronous>, transform_indices = @transform_19, window_bounds = array<i64: 1, 256>}, {pipeline_mode = #tpu.pipeline_mode<synchronous>, transform_indices = @transform_20, window_bounds = array<i64: 256, 64>}, {pipeline_mode = #tpu.pipeline_mode<synchronous>, transform_indices = @transform_21, window_bounds = array<i64: 1, 64>}, {pipeline_mode = #tpu.pipeline_mode<synchronous>, transform_indices = @transform_22, window_bounds = array<i64: 2, 32>}, {pipeline_mode = #tpu.pipeline_mode<synchronous>, transform_indices = @transform_23, window_bounds = array<i64: 16, 32>}, {transform_indices = @transform_24, window_bounds = array<i64: 1, 1>}]} {
    %c0 = arith.constant 0 : index
    %c0_0 = arith.constant 0 : index
    %0 = vector.load %arg1[%c0, %c0_0] : memref<2x32xf32, #tpu.memory_space<vmem>>, vector<2x32xf32>
    %c0_1 = arith.constant 0 : index
    %c0_2 = arith.constant 0 : index
    %1 = vector.load %arg7[%c0_1, %c0_2] : memref<32x256xf32, #tpu.memory_space<vmem>>, vector<32x256xf32>
    %cst = arith.constant dense<0.000000e+00> : vector<2x256xf32>
    %2 = tpu.matmul %0, %1, %cst {dimension_numbers = #tpu.dot_dimension_numbers<[1], [0], [0], [1], [0, 0, 1, 1], [], []>} : vector<2x32xf32>, vector<32x256xf32>, vector<2x256xf32> -> vector<2x256xf32>
    %c0_3 = arith.constant 0 : index
    %c0_4 = arith.constant 0 : index
    %3 = vector.load %arg8[%c0_3, %c0_4] : memref<1x256xf32, #tpu.memory_space<vmem>>, vector<1x256xf32>
    %4 = vector.broadcast %3 : vector<1x256xf32> to vector<2x256xf32>
    %5 = arith.addf %2, %4 : vector<2x256xf32>
    %cst_5 = arith.constant 0.000000e+00 : f32
    %6 = vector.broadcast %cst_5 : f32 to vector<2x256xf32>
    %7 = arith.maximumf %5, %6 : vector<2x256xf32>
    %c0_6 = arith.constant 0 : index
    %c0_7 = arith.constant 0 : index
    %8 = vector.load %arg9[%c0_6, %c0_7] : memref<256x64xf32, #tpu.memory_space<vmem>>, vector<256x64xf32>
    %cst_8 = arith.constant dense<0.000000e+00> : vector<2x64xf32>
    %9 = tpu.matmul %7, %8, %cst_8 {dimension_numbers = #tpu.dot_dimension_numbers<[1], [0], [0], [1], [0, 0, 1, 1], [], []>} : vector<2x256xf32>, vector<256x64xf32>, vector<2x64xf32> -> vector<2x64xf32>
    %c0_9 = arith.constant 0 : index
    %c0_10 = arith.constant 0 : index
    %10 = vector.load %arg10[%c0_9, %c0_10] : memref<1x64xf32, #tpu.memory_space<vmem>>, vector<1x64xf32>
    %11 = vector.broadcast %10 : vector<1x64xf32> to vector<2x64xf32>
    %12 = arith.addf %9, %11 : vector<2x64xf32>
    %13 = arith.negf %12 : vector<2x64xf32>
    %14 = math.exp %13 : vector<2x64xf32>
    %cst_11 = arith.constant 1.000000e+00 : f32
    %15 = vector.broadcast %cst_11 : f32 to vector<2x64xf32>
    %16 = arith.addf %15, %14 : vector<2x64xf32>
    %17 = arith.divf %15, %16 : vector<2x64xf32>
    %18 = vector.extract_strided_slice %17 {offsets = [0, 0], sizes = [2, 32], strides = [1, 1]} : vector<2x64xf32> to vector<2x32xf32>
    %19 = vector.extract_strided_slice %17 {offsets = [0, 32], sizes = [2, 32], strides = [1, 1]} : vector<2x64xf32> to vector<2x32xf32>
    %c0_12 = arith.constant 0 : index
    %c0_13 = arith.constant 0 : index
    %20 = vector.load %arg2[%c0_12, %c0_13] : memref<16x32xf32, #tpu.memory_space<vmem>>, vector<16x32xf32>
    %c0_14 = arith.constant 0 : index
    %c0_15 = arith.constant 0 : index
    %21 = vector.load %arg11[%c0_14, %c0_15] : memref<32x256xf32, #tpu.memory_space<vmem>>, vector<32x256xf32>
    %cst_16 = arith.constant dense<0.000000e+00> : vector<16x256xf32>
    %22 = tpu.matmul %20, %21, %cst_16 {dimension_numbers = #tpu.dot_dimension_numbers<[1], [0], [0], [1], [0, 0, 1, 1], [], []>} : vector<16x32xf32>, vector<32x256xf32>, vector<16x256xf32> -> vector<16x256xf32>
    %c0_17 = arith.constant 0 : index
    %c0_18 = arith.constant 0 : index
    %23 = vector.load %arg12[%c0_17, %c0_18] : memref<1x256xf32, #tpu.memory_space<vmem>>, vector<1x256xf32>
    %24 = vector.broadcast %23 : vector<1x256xf32> to vector<16x256xf32>
    %25 = arith.addf %22, %24 : vector<16x256xf32>
    %cst_19 = arith.constant 0.000000e+00 : f32
    %26 = vector.broadcast %cst_19 : f32 to vector<16x256xf32>
    %27 = arith.maximumf %25, %26 : vector<16x256xf32>
    %c0_20 = arith.constant 0 : index
    %c0_21 = arith.constant 0 : index
    %28 = vector.load %arg13[%c0_20, %c0_21] : memref<256x64xf32, #tpu.memory_space<vmem>>, vector<256x64xf32>
    %cst_22 = arith.constant dense<0.000000e+00> : vector<16x64xf32>
    %29 = tpu.matmul %27, %28, %cst_22 {dimension_numbers = #tpu.dot_dimension_numbers<[1], [0], [0], [1], [0, 0, 1, 1], [], []>} : vector<16x256xf32>, vector<256x64xf32>, vector<16x64xf32> -> vector<16x64xf32>
    %c0_23 = arith.constant 0 : index
    %c0_24 = arith.constant 0 : index
    %30 = vector.load %arg14[%c0_23, %c0_24] : memref<1x64xf32, #tpu.memory_space<vmem>>, vector<1x64xf32>
    %31 = vector.broadcast %30 : vector<1x64xf32> to vector<16x64xf32>
    %32 = arith.addf %29, %31 : vector<16x64xf32>
    %33 = arith.negf %32 : vector<16x64xf32>
    %34 = math.exp %33 : vector<16x64xf32>
    %cst_25 = arith.constant 1.000000e+00 : f32
    %35 = vector.broadcast %cst_25 : f32 to vector<16x64xf32>
    %36 = arith.addf %35, %34 : vector<16x64xf32>
    %37 = arith.divf %35, %36 : vector<16x64xf32>
    %38 = vector.extract_strided_slice %37 {offsets = [0, 0], sizes = [16, 32], strides = [1, 1]} : vector<16x64xf32> to vector<16x32xf32>
    %39 = vector.extract_strided_slice %37 {offsets = [0, 32], sizes = [16, 32], strides = [1, 1]} : vector<16x64xf32> to vector<16x32xf32>
    %c0_26 = arith.constant 0 : index
    %c0_27 = arith.constant 0 : index
    %40 = vector.load %arg3[%c0_26, %c0_27] : memref<2x32xf32, #tpu.memory_space<vmem>>, vector<2x32xf32>
    %c0_28 = arith.constant 0 : index
    %c0_29 = arith.constant 0 : index
    %41 = vector.load %arg15[%c0_28, %c0_29] : memref<32x256xf32, #tpu.memory_space<vmem>>, vector<32x256xf32>
    %cst_30 = arith.constant dense<0.000000e+00> : vector<2x256xf32>
    %42 = tpu.matmul %40, %41, %cst_30 {dimension_numbers = #tpu.dot_dimension_numbers<[1], [0], [0], [1], [0, 0, 1, 1], [], []>} : vector<2x32xf32>, vector<32x256xf32>, vector<2x256xf32> -> vector<2x256xf32>
    %c0_31 = arith.constant 0 : index
    %c0_32 = arith.constant 0 : index
    %43 = vector.load %arg16[%c0_31, %c0_32] : memref<1x256xf32, #tpu.memory_space<vmem>>, vector<1x256xf32>
    %44 = vector.broadcast %43 : vector<1x256xf32> to vector<2x256xf32>
    %45 = arith.addf %42, %44 : vector<2x256xf32>
    %cst_33 = arith.constant 0.000000e+00 : f32
    %46 = vector.broadcast %cst_33 : f32 to vector<2x256xf32>
    %47 = arith.maximumf %45, %46 : vector<2x256xf32>
    %c0_34 = arith.constant 0 : index
    %c0_35 = arith.constant 0 : index
    %48 = vector.load %arg17[%c0_34, %c0_35] : memref<256x64xf32, #tpu.memory_space<vmem>>, vector<256x64xf32>
    %cst_36 = arith.constant dense<0.000000e+00> : vector<2x64xf32>
    %49 = tpu.matmul %47, %48, %cst_36 {dimension_numbers = #tpu.dot_dimension_numbers<[1], [0], [0], [1], [0, 0, 1, 1], [], []>} : vector<2x256xf32>, vector<256x64xf32>, vector<2x64xf32> -> vector<2x64xf32>
    %c0_37 = arith.constant 0 : index
    %c0_38 = arith.constant 0 : index
    %50 = vector.load %arg18[%c0_37, %c0_38] : memref<1x64xf32, #tpu.memory_space<vmem>>, vector<1x64xf32>
    %51 = vector.broadcast %50 : vector<1x64xf32> to vector<2x64xf32>
    %52 = arith.addf %49, %51 : vector<2x64xf32>
    %53 = arith.negf %52 : vector<2x64xf32>
    %54 = math.exp %53 : vector<2x64xf32>
    %cst_39 = arith.constant 1.000000e+00 : f32
    %55 = vector.broadcast %cst_39 : f32 to vector<2x64xf32>
    %56 = arith.addf %55, %54 : vector<2x64xf32>
    %57 = arith.divf %55, %56 : vector<2x64xf32>
    %58 = vector.extract_strided_slice %57 {offsets = [0, 0], sizes = [2, 32], strides = [1, 1]} : vector<2x64xf32> to vector<2x32xf32>
    %59 = vector.extract_strided_slice %57 {offsets = [0, 32], sizes = [2, 32], strides = [1, 1]} : vector<2x64xf32> to vector<2x32xf32>
    %c0_40 = arith.constant 0 : index
    %c0_41 = arith.constant 0 : index
    %60 = vector.load %arg4[%c0_40, %c0_41] : memref<16x32xf32, #tpu.memory_space<vmem>>, vector<16x32xf32>
    %c0_42 = arith.constant 0 : index
    %c0_43 = arith.constant 0 : index
    %61 = vector.load %arg19[%c0_42, %c0_43] : memref<32x256xf32, #tpu.memory_space<vmem>>, vector<32x256xf32>
    %cst_44 = arith.constant dense<0.000000e+00> : vector<16x256xf32>
    %62 = tpu.matmul %60, %61, %cst_44 {dimension_numbers = #tpu.dot_dimension_numbers<[1], [0], [0], [1], [0, 0, 1, 1], [], []>} : vector<16x32xf32>, vector<32x256xf32>, vector<16x256xf32> -> vector<16x256xf32>
    %c0_45 = arith.constant 0 : index
    %c0_46 = arith.constant 0 : index
    %63 = vector.load %arg20[%c0_45, %c0_46] : memref<1x256xf32, #tpu.memory_space<vmem>>, vector<1x256xf32>
    %64 = vector.broadcast %63 : vector<1x256xf32> to vector<16x256xf32>
    %65 = arith.addf %62, %64 : vector<16x256xf32>
    %cst_47 = arith.constant 0.000000e+00 : f32
    %66 = vector.broadcast %cst_47 : f32 to vector<16x256xf32>
    %67 = arith.maximumf %65, %66 : vector<16x256xf32>
    %c0_48 = arith.constant 0 : index
    %c0_49 = arith.constant 0 : index
    %68 = vector.load %arg21[%c0_48, %c0_49] : memref<256x64xf32, #tpu.memory_space<vmem>>, vector<256x64xf32>
    %cst_50 = arith.constant dense<0.000000e+00> : vector<16x64xf32>
    %69 = tpu.matmul %67, %68, %cst_50 {dimension_numbers = #tpu.dot_dimension_numbers<[1], [0], [0], [1], [0, 0, 1, 1], [], []>} : vector<16x256xf32>, vector<256x64xf32>, vector<16x64xf32> -> vector<16x64xf32>
    %c0_51 = arith.constant 0 : index
    %c0_52 = arith.constant 0 : index
    %70 = vector.load %arg22[%c0_51, %c0_52] : memref<1x64xf32, #tpu.memory_space<vmem>>, vector<1x64xf32>
    %71 = vector.broadcast %70 : vector<1x64xf32> to vector<16x64xf32>
    %72 = arith.addf %69, %71 : vector<16x64xf32>
    %73 = arith.negf %72 : vector<16x64xf32>
    %74 = math.exp %73 : vector<16x64xf32>
    %cst_53 = arith.constant 1.000000e+00 : f32
    %75 = vector.broadcast %cst_53 : f32 to vector<16x64xf32>
    %76 = arith.addf %75, %74 : vector<16x64xf32>
    %77 = arith.divf %75, %76 : vector<16x64xf32>
    %78 = vector.extract_strided_slice %77 {offsets = [0, 0], sizes = [16, 32], strides = [1, 1]} : vector<16x64xf32> to vector<16x32xf32>
    %79 = vector.extract_strided_slice %77 {offsets = [0, 32], sizes = [16, 32], strides = [1, 1]} : vector<16x64xf32> to vector<16x32xf32>
    %c0_54 = arith.constant 0 : index
    %c0_55 = arith.constant 0 : index
    %80 = vector.load %arg5[%c0_54, %c0_55] : memref<2x32xf32, #tpu.memory_space<vmem>>, vector<2x32xf32>
    %81 = arith.mulf %19, %80 : vector<2x32xf32>
    %82 = arith.addf %18, %81 : vector<2x32xf32>
    %c0_56 = arith.constant 0 : index
    %c0_57 = arith.constant 0 : index
    %83 = vector.load %arg23[%c0_56, %c0_57] : memref<2x32xf32, #tpu.memory_space<vmem>>, vector<2x32xf32>
    tpu.vector_store %arg23[%c0_56, %c0_57], %82 {strides = array<i32>} : memref<2x32xf32, #tpu.memory_space<vmem>>, vector<2x32xf32>,
    %c0_58 = arith.constant 0 : index
    %c0_59 = arith.constant 0 : index
    %84 = vector.load %arg6[%c0_58, %c0_59] : memref<16x32xf32, #tpu.memory_space<vmem>>, vector<16x32xf32>
    %85 = arith.mulf %39, %84 : vector<16x32xf32>
    %86 = arith.addf %38, %85 : vector<16x32xf32>
    %c0_60 = arith.constant 0 : index
    %c0_61 = arith.constant 0 : index
    %87 = vector.load %arg24[%c0_60, %c0_61] : memref<16x32xf32, #tpu.memory_space<vmem>>, vector<16x32xf32>
    tpu.vector_store %arg24[%c0_60, %c0_61], %86 {strides = array<i32>} : memref<16x32xf32, #tpu.memory_space<vmem>>, vector<16x32xf32>,
    %88 = math.absf %19 : vector<2x32xf32>
    %89 = math.absf %39 : vector<16x32xf32>
    %90 = math.absf %59 : vector<2x32xf32>
    %91 = math.absf %79 : vector<16x32xf32>
    %92 = arith.subf %18, %58 : vector<2x32xf32>
    %93 = arith.mulf %92, %92 : vector<2x32xf32>
    %94 = arith.mulf %88, %88 : vector<2x32xf32>
    %95 = arith.addf %93, %94 : vector<2x32xf32>
    %cst_62 = arith.constant 5.000000e-01 : f32
    %96 = vector.broadcast %cst_62 : f32 to vector<2x32xf32>
    %97 = arith.mulf %95, %96 : vector<2x32xf32>
    %cst_63 = arith.constant 9.99999993E-9 : f32
    %98 = vector.broadcast %cst_63 : f32 to vector<2x32xf32>
    %99 = arith.addf %90, %98 : vector<2x32xf32>
    %100 = arith.mulf %99, %99 : vector<2x32xf32>
    %101 = arith.mulf %97, %100 : vector<2x32xf32>
    %cst_64 = arith.constant 1.000000e-16 : f32
    %102 = vector.broadcast %cst_64 : f32 to vector<2x32xf32>
    %103 = arith.addf %90, %102 : vector<2x32xf32>
    %cst_65 = arith.constant 1.000000e-16 : f32
    %104 = vector.broadcast %cst_65 : f32 to vector<2x32xf32>
    %105 = arith.addf %88, %104 : vector<2x32xf32>
    %106 = arith.divf %103, %105 : vector<2x32xf32>
    %107 = math.log %106 : vector<2x32xf32>
    %108 = arith.addf %101, %107 : vector<2x32xf32>
    %109 = vector.shape_cast %108 : vector<2x32xf32> to vector<1x2x32xf32>
    %cst_66 = arith.constant dense<0.000000e+00> : vector<1xf32>
    %110 = vector.multi_reduction <add>, %109, %cst_66 [1, 2] : vector<1x2x32xf32> to vector<1xf32>
    %111 = vector.shape_cast %110 : vector<1xf32> to vector<1x1x1xf32>
    %112 = vector.extract %111[0, 0, 0] : f32 from vector<1x1x1xf32>
    %cst_67 = arith.constant 6.400000e+01 : f32
    %113 = arith.divf %112, %cst_67 : f32
    %114 = arith.subf %38, %78 : vector<16x32xf32>
    %115 = arith.mulf %114, %114 : vector<16x32xf32>
    %116 = arith.mulf %89, %89 : vector<16x32xf32>
    %117 = arith.addf %115, %116 : vector<16x32xf32>
    %cst_68 = arith.constant 5.000000e-01 : f32
    %118 = vector.broadcast %cst_68 : f32 to vector<16x32xf32>
    %119 = arith.mulf %117, %118 : vector<16x32xf32>
    %cst_69 = arith.constant 9.99999993E-9 : f32
    %120 = vector.broadcast %cst_69 : f32 to vector<16x32xf32>
    %121 = arith.addf %91, %120 : vector<16x32xf32>
    %122 = arith.mulf %121, %121 : vector<16x32xf32>
    %123 = arith.mulf %119, %122 : vector<16x32xf32>
    %cst_70 = arith.constant 1.000000e-16 : f32
    %124 = vector.broadcast %cst_70 : f32 to vector<16x32xf32>
    %125 = arith.addf %91, %124 : vector<16x32xf32>
    %cst_71 = arith.constant 1.000000e-16 : f32
    %126 = vector.broadcast %cst_71 : f32 to vector<16x32xf32>
    %127 = arith.addf %89, %126 : vector<16x32xf32>
    %128 = arith.divf %125, %127 : vector<16x32xf32>
    %129 = math.log %128 : vector<16x32xf32>
    %130 = arith.addf %123, %129 : vector<16x32xf32>
    %131 = vector.shape_cast %130 : vector<16x32xf32> to vector<1x16x32xf32>
    %cst_72 = arith.constant dense<0.000000e+00> : vector<1xf32>
    %132 = vector.multi_reduction <add>, %131, %cst_72 [1, 2] : vector<1x16x32xf32> to vector<1xf32>
    %133 = vector.shape_cast %132 : vector<1xf32> to vector<1x1x1xf32>
    %134 = vector.extract %133[0, 0, 0] : f32 from vector<1x1x1xf32>
    %cst_73 = arith.constant 5.120000e+02 : f32
    %135 = arith.divf %134, %cst_73 : f32
    %136 = arith.addf %113, %135 : f32
    %cst_74 = arith.constant 0.000000e+00 : f32
    %137 = vector.broadcast %cst_74 : f32 to vector<2x32xf32>
    %138 = arith.subf %58, %137 : vector<2x32xf32>
    %139 = arith.mulf %138, %138 : vector<2x32xf32>
    %140 = arith.mulf %90, %90 : vector<2x32xf32>
    %141 = arith.addf %139, %140 : vector<2x32xf32>
    %cst_75 = arith.constant 5.000000e-01 : f32
    %142 = vector.broadcast %cst_75 : f32 to vector<2x32xf32>
    %143 = arith.mulf %141, %142 : vector<2x32xf32>
    %cst_76 = arith.constant 1.000000e+00 : f32
    %144 = vector.broadcast %cst_76 : f32 to vector<2x32xf32>
    %145 = arith.mulf %143, %144 : vector<2x32xf32>
    %cst_77 = arith.constant 1.000000e-16 : f32
    %146 = vector.broadcast %cst_77 : f32 to vector<2x32xf32>
    %147 = arith.addf %90, %146 : vector<2x32xf32>
    %cst_78 = arith.constant 1.000000e+00 : f32
    %148 = vector.broadcast %cst_78 : f32 to vector<2x32xf32>
    %149 = arith.divf %148, %147 : vector<2x32xf32>
    %150 = math.log %149 : vector<2x32xf32>
    %151 = arith.addf %145, %150 : vector<2x32xf32>
    %152 = vector.shape_cast %151 : vector<2x32xf32> to vector<1x2x32xf32>
    %cst_79 = arith.constant dense<0.000000e+00> : vector<1xf32>
    %153 = vector.multi_reduction <add>, %152, %cst_79 [1, 2] : vector<1x2x32xf32> to vector<1xf32>
    %154 = vector.shape_cast %153 : vector<1xf32> to vector<1x1x1xf32>
    %155 = vector.extract %154[0, 0, 0] : f32 from vector<1x1x1xf32>
    %cst_80 = arith.constant 6.400000e+01 : f32
    %156 = arith.divf %155, %cst_80 : f32
    %157 = arith.addf %136, %156 : f32
    %cst_81 = arith.constant 0.000000e+00 : f32
    %158 = vector.broadcast %cst_81 : f32 to vector<16x32xf32>
    %159 = arith.subf %78, %158 : vector<16x32xf32>
    %160 = arith.mulf %159, %159 : vector<16x32xf32>
    %161 = arith.mulf %91, %91 : vector<16x32xf32>
    %162 = arith.addf %160, %161 : vector<16x32xf32>
    %cst_82 = arith.constant 5.000000e-01 : f32
    %163 = vector.broadcast %cst_82 : f32 to vector<16x32xf32>
    %164 = arith.mulf %162, %163 : vector<16x32xf32>
    %cst_83 = arith.constant 1.000000e+00 : f32
    %165 = vector.broadcast %cst_83 : f32 to vector<16x32xf32>
    %166 = arith.mulf %164, %165 : vector<16x32xf32>
    %cst_84 = arith.constant 1.000000e-16 : f32
    %167 = vector.broadcast %cst_84 : f32 to vector<16x32xf32>
    %168 = arith.addf %91, %167 : vector<16x32xf32>
    %cst_85 = arith.constant 1.000000e+00 : f32
    %169 = vector.broadcast %cst_85 : f32 to vector<16x32xf32>
    %170 = arith.divf %169, %168 : vector<16x32xf32>
    %171 = math.log %170 : vector<16x32xf32>
    %172 = arith.addf %166, %171 : vector<16x32xf32>
    %173 = vector.shape_cast %172 : vector<16x32xf32> to vector<1x16x32xf32>
    %cst_86 = arith.constant dense<0.000000e+00> : vector<1xf32>
    %174 = vector.multi_reduction <add>, %173, %cst_86 [1, 2] : vector<1x16x32xf32> to vector<1xf32>
    %175 = vector.shape_cast %174 : vector<1xf32> to vector<1x1x1xf32>
    %176 = vector.extract %175[0, 0, 0] : f32 from vector<1x1x1xf32>
    %cst_87 = arith.constant 5.120000e+02 : f32
    %177 = arith.divf %176, %cst_87 : f32
    %178 = arith.addf %157, %177 : f32
    %c0_88 = arith.constant 0 : index
    %c0_89 = arith.constant 0 : index
    %179 = memref.load %arg25[%c0_88, %c0_89] : memref<1x1xf32, #tpu.memory_space<smem>>
    memref.store %178, %arg25[%c0_88, %c0_89] : memref<1x1xf32, #tpu.memory_space<smem>>
    return
  }
  func.func @transform_0(%arg0: i32) -> (i32, i32) {
    %c0_i32 = arith.constant 0 : i32
    %c0_i32_0 = arith.constant 0 : i32
    %c0_i32_1 = arith.constant 0 : i32
    return %c0_i32, %c0_i32_0 : i32, i32
  }
  func.func @transform_1(%arg0: i32) -> (i32, i32) {
    %c0_i32 = arith.constant 0 : i32
    %c0_i32_0 = arith.constant 0 : i32
    %c0_i32_1 = arith.constant 0 : i32
    return %c0_i32, %c0_i32_0 : i32, i32
  }
  func.func @transform_2(%arg0: i32) -> (i32, i32) {
    %c0_i32 = arith.constant 0 : i32
    %c0_i32_0 = arith.constant 0 : i32
    %c0_i32_1 = arith.constant 0 : i32
    return %c0_i32, %c0_i32_0 : i32, i32
  }
  func.func @transform_3(%arg0: i32) -> (i32, i32) {
    %c0_i32 = arith.constant 0 : i32
    %c0_i32_0 = arith.constant 0 : i32
    %c0_i32_1 = arith.constant 0 : i32
    return %c0_i32, %c0_i32_0 : i32, i32
  }
  func.func @transform_4(%arg0: i32) -> (i32, i32) {
    %c0_i32 = arith.constant 0 : i32
    %c0_i32_0 = arith.constant 0 : i32
    %c0_i32_1 = arith.constant 0 : i32
    return %c0_i32, %c0_i32_0 : i32, i32
  }
  func.func @transform_5(%arg0: i32) -> (i32, i32) {
    %c0_i32 = arith.constant 0 : i32
    %c0_i32_0 = arith.constant 0 : i32
    %c0_i32_1 = arith.constant 0 : i32
    return %c0_i32, %c0_i32_0 : i32, i32
  }
  func.func @transform_6(%arg0: i32) -> (i32, i32) {
    %c0_i32 = arith.constant 0 : i32
    %c0_i32_0 = arith.constant 0 : i32
    %c0_i32_1 = arith.constant 0 : i32
    return %c0_i32, %c0_i32_0 : i32, i32
  }
  func.func @transform_7(%arg0: i32) -> (i32, i32) {
    %c0_i32 = arith.constant 0 : i32
    %c0_i32_0 = arith.constant 0 : i32
    %c0_i32_1 = arith.constant 0 : i32
    return %c0_i32, %c0_i32_0 : i32, i32
  }
  func.func @transform_8(%arg0: i32) -> (i32, i32) {
    %c0_i32 = arith.constant 0 : i32
    %c0_i32_0 = arith.constant 0 : i32
    %c0_i32_1 = arith.constant 0 : i32
    return %c0_i32, %c0_i32_0 : i32, i32
  }
  func.func @transform_9(%arg0: i32) -> (i32, i32) {
    %c0_i32 = arith.constant 0 : i32
    %c0_i32_0 = arith.constant 0 : i32
    %c0_i32_1 = arith.constant 0 : i32
    return %c0_i32, %c0_i32_0 : i32, i32
  }
  func.func @transform_10(%arg0: i32) -> (i32, i32) {
    %c0_i32 = arith.constant 0 : i32
    %c0_i32_0 = arith.constant 0 : i32
    %c0_i32_1 = arith.constant 0 : i32
    return %c0_i32, %c0_i32_0 : i32, i32
  }
  func.func @transform_11(%arg0: i32) -> (i32, i32) {
    %c0_i32 = arith.constant 0 : i32
    %c0_i32_0 = arith.constant 0 : i32
    %c0_i32_1 = arith.constant 0 : i32
    return %c0_i32, %c0_i32_0 : i32, i32
  }
  func.func @transform_12(%arg0: i32) -> (i32, i32) {
    %c0_i32 = arith.constant 0 : i32
    %c0_i32_0 = arith.constant 0 : i32
    %c0_i32_1 = arith.constant 0 : i32
    return %c0_i32, %c0_i32_0 : i32, i32
  }
  func.func @transform_13(%arg0: i32) -> (i32, i32) {
    %c0_i32 = arith.constant 0 : i32
    %c0_i32_0 = arith.constant 0 : i32
    %c0_i32_1 = arith.constant 0 : i32
    return %c0_i32, %c0_i32_0 : i32, i32
  }
  func.func @transform_14(%arg0: i32) -> (i32, i32) {
    %c0_i32 = arith.constant 0 : i32
    %c0_i32_0 = arith.constant 0 : i32
    %c0_i32_1 = arith.constant 0 : i32
    return %c0_i32, %c0_i32_0 : i32, i32
  }
  func.func @transform_15(%arg0: i32) -> (i32, i32) {
    %c0_i32 = arith.constant 0 : i32
    %c0_i32_0 = arith.constant 0 : i32
    %c0_i32_1 = arith.constant 0 : i32
    return %c0_i32, %c0_i32_0 : i32, i32
  }
  func.func @transform_16(%arg0: i32) -> (i32, i32) {
    %c0_i32 = arith.constant 0 : i32
    %c0_i32_0 = arith.constant 0 : i32
    %c0_i32_1 = arith.constant 0 : i32
    return %c0_i32, %c0_i32_0 : i32, i32
  }
  func.func @transform_17(%arg0: i32) -> (i32, i32) {
    %c0_i32 = arith.constant 0 : i32
    %c0_i32_0 = arith.constant 0 : i32
    %c0_i32_1 = arith.constant 0 : i32
    return %c0_i32, %c0_i32_0 : i32, i32
  }
  func.func @transform_18(%arg0: i32) -> (i32, i32) {
    %c0_i32 = arith.constant 0 : i32
    %c0_i32_0 = arith.constant 0 : i32
    %c0_i32_1 = arith.constant 0 : i32
    return %c0_i32, %c0_i32_0 : i32, i32
  }
  func.func @transform_19(%arg0: i32) -> (i32, i32) {
    %c0_i32 = arith.constant 0 : i32
    %c0_i32_0 = arith.constant 0 : i32
    %c0_i32_1 = arith.constant 0 : i32
    return %c0_i32, %c0_i32_0 : i32, i32
  }
  func.func @transform_20(%arg0: i32) -> (i32, i32) {
    %c0_i32 = arith.constant 0 : i32
    %c0_i32_0 = arith.constant 0 : i32
    %c0_i32_1 = arith.constant 0 : i32
    return %c0_i32, %c0_i32_0 : i32, i32
  }
  func.func @transform_21(%arg0: i32) -> (i32, i32) {
    %c0_i32 = arith.constant 0 : i32
    %c0_i32_0 = arith.constant 0 : i32
    %c0_i32_1 = arith.constant 0 : i32
    return %c0_i32, %c0_i32_0 : i32, i32
  }
  func.func @transform_22(%arg0: i32) -> (i32, i32) {
    %c0_i32 = arith.constant 0 : i32
    %c0_i32_0 = arith.constant 0 : i32
    %c0_i32_1 = arith.constant 0 : i32
    return %c0_i32, %c0_i32_0 : i32, i32
  }
  func.func @transform_23(%arg0: i32) -> (i32, i32) {
    %c0_i32 = arith.constant 0 : i32
    %c0_i32_0 = arith.constant 0 : i32
    %c0_i32_1 = arith.constant 0 : i32
    return %c0_i32, %c0_i32_0 : i32, i32
  }
  func.func @transform_24(%arg0: i32) -> (i32, i32) {
    %c0_i32 = arith.constant 0 : i32
    %c0_i32_0 = arith.constant 0 : i32
    %c0_i32_1 = arith.constant 0 : i32
    return %c0_i32, %c0_i32_0 : i32, i32
  }
}

</mosaic_0001>

<llo_original>
// kernel: vae_tower_forward.3
$region0: #{vae_tower_forward.3}
  #allocation0 [shape = 'u32[]', space=smem, size = 0x4, offset = 0x4, fixed_abs, tag = 'smem constant byte address 0x4 - core index']
  #allocation1 [shape = 'u32[72,128]{1,0:T(1,128)}', space=vmem, size = 0x9000, scoped, tag = 'internal scratch']
  %s0 = inlined_call_operand.vmem [shape: f32[2,32], index: 0, kind: input, shape index: {}]
  %s1 = inlined_call_operand.vmem [shape: f32[16,32], index: 1, kind: input, shape index: {}]
  %s2 = inlined_call_operand.vmem [shape: f32[2,32], index: 2, kind: input, shape index: {}]
  %s3 = inlined_call_operand.vmem [shape: f32[16,32], index: 3, kind: input, shape index: {}]
  %s4 = inlined_call_operand.vmem [shape: f32[2,32], index: 4, kind: input, shape index: {}, may-alias: {4,22}]
  %s5 = inlined_call_operand.vmem [shape: f32[16,32], index: 5, kind: input, shape index: {}, may-alias: {5,23}]
  %s6 = inlined_call_operand.vmem [shape: f32[32,256], index: 6, kind: input, shape index: {}]
  %s7 = inlined_call_operand.vmem [shape: f32[1,256], index: 7, kind: input, shape index: {}]
  %s8 = inlined_call_operand.vmem [shape: f32[256,64], index: 8, kind: input, shape index: {}]
  %s9 = inlined_call_operand.vmem [shape: f32[1,64], index: 9, kind: input, shape index: {}]
  %s10 = inlined_call_operand.vmem [shape: f32[32,256], index: 10, kind: input, shape index: {}]
  %s11 = inlined_call_operand.vmem [shape: f32[1,256], index: 11, kind: input, shape index: {}]
  %s12 = inlined_call_operand.vmem [shape: f32[256,64], index: 12, kind: input, shape index: {}]
  %s13 = inlined_call_operand.vmem [shape: f32[1,64], index: 13, kind: input, shape index: {}]
  %s14 = inlined_call_operand.vmem [shape: f32[32,256], index: 14, kind: input, shape index: {}]
  %s15 = inlined_call_operand.vmem [shape: f32[1,256], index: 15, kind: input, shape index: {}]
  %s16 = inlined_call_operand.vmem [shape: f32[256,64], index: 16, kind: input, shape index: {}]
  %s17 = inlined_call_operand.vmem [shape: f32[1,64], index: 17, kind: input, shape index: {}]
  %s18 = inlined_call_operand.vmem [shape: f32[32,256], index: 18, kind: input, shape index: {}]
  %s19 = inlined_call_operand.vmem [shape: f32[1,256], index: 19, kind: input, shape index: {}]
  %s20 = inlined_call_operand.vmem [shape: f32[256,64], index: 20, kind: input, shape index: {}]
  %s21 = inlined_call_operand.vmem [shape: f32[1,64], index: 21, kind: input, shape index: {}]
  %s22 = inlined_call_operand.vmem [shape: f32[2,32], index: 22, kind: output, shape index: {0}, may-alias: {4,22}]
  %s23 = inlined_call_operand.vmem [shape: f32[16,32], index: 23, kind: output, shape index: {1}, may-alias: {5,23}]
  %s24 = inlined_call_operand.hbm [shape: f32[1,1], index: 24, kind: output, shape index: {2}]
  %25 = xla_tuple %s22, %s23, %s24
  %s26 = sld [smem:[#allocation0]]
  $region114: #{vae_tower_forward.3} parent=0
    _
  %s28 = ssub.s32 1, %s26
  %s29 = scalar_select 0, %s28, %s26
  $region1: #{vae_tower_forward.3} parent=0
    #allocation2 [shape = 'u8[512]{0}', space=smem, size = 0x200, scoped, tag = 'output window, operand 2, single buffered']
    #allocation3 [shape = 's32[1]{0}', space=sflag, size = 0x4, scoped, tag = 'scoped memory for vae_tower_forward.3']
    %30 = vsyncpa [#allocation3], 0
    // Predicated region
    $region2: #{vae_tower_forward.3} parent=1 // pred_check
      _
    $region3: #{vae_tower_forward.3} parent=1 // pred_check_branch
      %32 = sbr.rel (0) target = $region5
    $region4: #{vae_tower_forward.3} parent=1 // pred_region
      _
    $region5: #{vae_tower_forward.3} parent=1 // pred_fallthru
      _
    // Predicated region
    $region6: #{vae_tower_forward.3} parent=1 // pred_check
      _
    $region7: #{vae_tower_forward.3} parent=1 // pred_check_branch
      %34 = sbr.rel (0) target = $region9
    $region8: #{vae_tower_forward.3} parent=1 // pred_region
      _
    $region9: #{vae_tower_forward.3} parent=1 // pred_fallthru
      _
    // Predicated region
    $region10: #{vae_tower_forward.3} parent=1 // pred_check
      _
    $region11: #{vae_tower_forward.3} parent=1 // pred_check_branch
      %36 = sbr.rel (0) target = $region13
    $region12: #{vae_tower_forward.3} parent=1 // pred_region
      _
    $region13: #{vae_tower_forward.3} parent=1 // pred_fallthru
      _
    // Predicated region
    $region14: #{vae_tower_forward.3} parent=1 // pred_check
      _
    $region15: #{vae_tower_forward.3} parent=1 // pred_check_branch
      %38 = sbr.rel (0) target = $region17
    $region16: #{vae_tower_forward.3} parent=1 // pred_region
      _
    $region17: #{vae_tower_forward.3} parent=1 // pred_fallthru
      _
    // Predicated region
    $region18: #{vae_tower_forward.3} parent=1 // pred_check
      _
    $region19: #{vae_tower_forward.3} parent=1 // pred_check_branch
      %40 = sbr.rel (0) target = $region21
    $region20: #{vae_tower_forward.3} parent=1 // pred_region
      _
    $region21: #{vae_tower_forward.3} parent=1 // pred_fallthru
      _
    // Predicated region
    $region22: #{vae_tower_forward.3} parent=1 // pred_check
      _
    $region23: #{vae_tower_forward.3} parent=1 // pred_check_branch
      %42 = sbr.rel (0) target = $region25
    $region24: #{vae_tower_forward.3} parent=1 // pred_region
      _
    $region25: #{vae_tower_forward.3} parent=1 // pred_fallthru
      _
    // Predicated region
    $region26: #{vae_tower_forward.3} parent=1 // pred_check
      _
    $region27: #{vae_tower_forward.3} parent=1 // pred_check_branch
      %44 = sbr.rel (0) target = $region29
    $region28: #{vae_tower_forward.3} parent=1 // pred_region
      _
    $region29: #{vae_tower_forward.3} parent=1 // pred_fallthru
      _
    // Predicated region
    $region30: #{vae_tower_forward.3} parent=1 // pred_check
      _
    $region31: #{vae_tower_forward.3} parent=1 // pred_check_branch
      %46 = sbr.rel (0) target = $region33
    $region32: #{vae_tower_forward.3} parent=1 // pred_region
      _
    $region33: #{vae_tower_forward.3} parent=1 // pred_fallthru
      _
    // Predicated region
    $region34: #{vae_tower_forward.3} parent=1 // pred_check
      _
    $region35: #{vae_tower_forward.3} parent=1 // pred_check_branch
      %48 = sbr.rel (0) target = $region37
    $region36: #{vae_tower_forward.3} parent=1 // pred_region
      _
    $region37: #{vae_tower_forward.3} parent=1 // pred_fallthru
      _
    // Predicated region
    $region38: #{vae_tower_forward.3} parent=1 // pred_check
      _
    $region39: #{vae_tower_forward.3} parent=1 // pred_check_branch
      %50 = sbr.rel (0) target = $region41
    $region40: #{vae_tower_forward.3} parent=1 // pred_region
      _
    $region41: #{vae_tower_forward.3} parent=1 // pred_fallthru
      _
    // Predicated region
    $region42: #{vae_tower_forward.3} parent=1 // pred_check
      _
    $region43: #{vae_tower_forward.3} parent=1 // pred_check_branch
      %52 = sbr.rel (0) target = $region45
    $region44: #{vae_tower_forward.3} parent=1 // pred_region
      _
    $region45: #{vae_tower_forward.3} parent=1 // pred_fallthru
      _
    // Predicated region
    $region46: #{vae_tower_forward.3} parent=1 // pred_check
      _
    $region47: #{vae_tower_forward.3} parent=1 // pred_check_branch
      %54 = sbr.rel (0) target = $region49
    $region48: #{vae_tower_forward.3} parent=1 // pred_region
      _
    $region49: #{vae_tower_forward.3} parent=1 // pred_fallthru
      _
    // Predicated region
    $region50: #{vae_tower_forward.3} parent=1 // pred_check
      _
    $region51: #{vae_tower_forward.3} parent=1 // pred_check_branch
      %56 = sbr.rel (0) target = $region53
    $region52: #{vae_tower_forward.3} parent=1 // pred_region
      _
    $region53: #{vae_tower_forward.3} parent=1 // pred_fallthru
      _
    // Predicated region
    $region54: #{vae_tower_forward.3} parent=1 // pred_check
      _
    $region55: #{vae_tower_forward.3} parent=1 // pred_check_branch
      %58 = sbr.rel (0) target = $region57
    $region56: #{vae_tower_forward.3} parent=1 // pred_region
      _
    $region57: #{vae_tower_forward.3} parent=1 // pred_fallthru
      _
    // Predicated region
    $region58: #{vae_tower_forward.3} parent=1 // pred_check
      _
    $region59: #{vae_tower_forward.3} parent=1 // pred_check_branch
      %60 = sbr.rel (0) target = $region61
    $region60: #{vae_tower_forward.3} parent=1 // pred_region
      _
    $region61: #{vae_tower_forward.3} parent=1 // pred_fallthru
      _
    // Predicated region
    $region62: #{vae_tower_forward.3} parent=1 // pred_check
      _
    $region63: #{vae_tower_forward.3} parent=1 // pred_check_branch
      %62 = sbr.rel (0) target = $region65
    $region64: #{vae_tower_forward.3} parent=1 // pred_region
      _
    $region65: #{vae_tower_forward.3} parent=1 // pred_fallthru
      _
    // Predicated region
    $region66: #{vae_tower_forward.3} parent=1 // pred_check
      _
    $region67: #{vae_tower_forward.3} parent=1 // pred_check_branch
      %64 = sbr.rel (0) target = $region69
    $region68: #{vae_tower_forward.3} parent=1 // pred_region
      _
    $region69: #{vae_tower_forward.3} parent=1 // pred_fallthru
      _
    // Predicated region
    $region70: #{vae_tower_forward.3} parent=1 // pred_check
      _
    $region71: #{vae_tower_forward.3} parent=1 // pred_check_branch
      %66 = sbr.rel (0) target = $region73
    $region72: #{vae_tower_forward.3} parent=1 // pred_region
      _
    $region73: #{vae_tower_forward.3} parent=1 // pred_fallthru
      _
    // Predicated region
    $region74: #{vae_tower_forward.3} parent=1 // pred_check
      _
    $region75: #{vae_tower_forward.3} parent=1 // pred_check_branch
      %68 = sbr.rel (0) target = $region77
    $region76: #{vae_tower_forward.3} parent=1 // pred_region
      _
    $region77: #{vae_tower_forward.3} parent=1 // pred_fallthru
      _
    // Predicated region
    $region78: #{vae_tower_forward.3} parent=1 // pred_check
      _
    $region79: #{vae_tower_forward.3} parent=1 // pred_check_branch
      %70 = sbr.rel (0) target = $region81
    $region80: #{vae_tower_forward.3} parent=1 // pred_region
      _
    $region81: #{vae_tower_forward.3} parent=1 // pred_fallthru
      _
    // Predicated region
    $region82: #{vae_tower_forward.3} parent=1 // pred_check
      _
    $region83: #{vae_tower_forward.3} parent=1 // pred_check_branch
      %72 = sbr.rel (0) target = $region85
    $region84: #{vae_tower_forward.3} parent=1 // pred_region
      _
    $region85: #{vae_tower_forward.3} parent=1 // pred_fallthru
      _
    // Predicated region
    $region86: #{vae_tower_forward.3} parent=1 // pred_check
      _
    $region87: #{vae_tower_forward.3} parent=1 // pred_check_branch
      %74 = sbr.rel (0) target = $region89
    $region88: #{vae_tower_forward.3} parent=1 // pred_region
      _
    $region89: #{vae_tower_forward.3} parent=1 // pred_fallthru
      _
    %v75 = vld [vmem:[%s0] sm:$0x3]
    %v76 = vld [vmem:[%s6] sm:$0xff]
    %v77 = vld [vmem:[%s6 + $0x8] sm:$0xff]
    %v78 = vld [vmem:[%s6 + $0x10] sm:$0xff]
    %v79 = vld [vmem:[%s6 + $0x18] sm:$0xff]
    %v80 = vld [vmem:[%s6 + $0x20] sm:$0xff]
    %v81 = vld [vmem:[%s6 + $0x28] sm:$0xff]
    %v82 = vld [vmem:[%s6 + $0x30] sm:$0xff]
    %v83 = vld [vmem:[%s6 + $0x38] sm:$0xff]
    %v84 = vld [vmem:[%s7] sm:$0x3]
    %v86 = vperm.slane %v84, 0
    %v87 = vperm.slane %v84, 1
    %vm90 = vcmask 261120
    %v92 = vsel %vm90, %v75, 0
    %94 = vmatpush.msra.mxu0 0.0
    %95 = vmatpush.msra.mxu0 0.0
    %96 = vmatpush.msra.mxu0 0.0
    %97 = vmatpush.msra.mxu0 0.0
    %98 = vmatpush.msra.mxu0 0.0
    %99 = vmatpush.msra.mxu0 0.0
    %100 = vmatpush.msra.mxu0 0.0
    %101 = vmatpush.msra.mxu0 0.0
    %102 = vmatpush.msra.mxu0 0.0
    %103 = vmatpush.msra.mxu0 0.0
    %104 = vmatpush.msra.mxu0 0.0
    %105 = vmatpush.msra.mxu0 0.0
    %106 = vmatpush.msra.mxu0 %v82
    %107 = vmatpush.msra.mxu0 %v80
    %108 = vmatpush.msra.mxu0 %v78
    %109 = vmatpush.msra.mxu0 %v76
    %110 = vmatmul.f32.gmra.mxu0 %v92
    %v111 = vpop.f32.mrf.mxu0
    %v112 = vadd.f32 %v86, %v111
    %113 = vdwg.mxu0
    %114 = vmatpush.msra.mxu0 0.0
    %115 = vmatpush.msra.mxu0 0.0
    %116 = vmatpush.msra.mxu0 0.0
    %117 = vmatpush.msra.mxu0 0.0
    %118 = vmatpush.msra.mxu0 0.0
    %119 = vmatpush.msra.mxu0 0.0
    %120 = vmatpush.msra.mxu0 0.0
    %121 = vmatpush.msra.mxu0 0.0
    %122 = vmatpush.msra.mxu0 0.0
    %123 = vmatpush.msra.mxu0 0.0
    %124 = vmatpush.msra.mxu0 0.0
    %125 = vmatpush.msra.mxu0 0.0
    %126 = vmatpush.msra.mxu0 %v83
    %127 = vmatpush.msra.mxu0 %v81
    %128 = vmatpush.msra.mxu0 %v79
    %129 = vmatpush.msra.mxu0 %v77
    %130 = vmatmul.f32.gmra.mxu0 %v92
    %v131 = vpop.f32.mrf.mxu0
    %v132 = vadd.f32 %v87, %v131
    %133 = vdwg.mxu0
    %v134 = vmax.f32 %v112, 0.0
    %v135 = vmax.f32 %v132, 0.0
    %v136 = vld [vmem:[%s8] sm:$0xff]
    %v137 = vld [vmem:[%s8 + $0x8] sm:$0xff]
    %v138 = vld [vmem:[%s8 + $0x10] sm:$0xff]
    %v139 = vld [vmem:[%s8 + $0x18] sm:$0xff]
    %v140 = vld [vmem:[%s8 + $0x20] sm:$0xff]
    %v141 = vld [vmem:[%s8 + $0x28] sm:$0xff]
    %v142 = vld [vmem:[%s8 + $0x30] sm:$0xff]
    %v143 = vld [vmem:[%s8 + $0x38] sm:$0xff]
    %v144 = vld [vmem:[%s8 + $0x40] sm:$0xff]
    %v145 = vld [vmem:[%s8 + $0x48] sm:$0xff]
    %v146 = vld [vmem:[%s8 + $0x50] sm:$0xff]
    %v147 = vld [vmem:[%s8 + $0x58] sm:$0xff]
    %v148 = vld [vmem:[%s8 + $0x60] sm:$0xff]
    %v149 = vld [vmem:[%s8 + $0x68] sm:$0xff]
    %v150 = vld [vmem:[%s8 + $0x70] sm:$0xff]
    %v151 = vld [vmem:[%s8 + $0x78] sm:$0xff]
    %v152 = vld [vmem:[%s8 + $0x80] sm:$0xff]
    %v153 = vld [vmem:[%s8 + $0x88] sm:$0xff]
    %v154 = vld [vmem:[%s8 + $0x90] sm:$0xff]
    %v155 = vld [vmem:[%s8 + $0x98] sm:$0xff]
    %v156 = vld [vmem:[%s8 + $0xa0] sm:$0xff]
    %v157 = vld [vmem:[%s8 + $0xa8] sm:$0xff]
    %v158 = vld [vmem:[%s8 + $0xb0] sm:$0xff]
    %v159 = vld [vmem:[%s8 + $0xb8] sm:$0xff]
    %v160 = vld [vmem:[%s8 + $0xc0] sm:$0xff]
    %v161 = vld [vmem:[%s8 + $0xc8] sm:$0xff]
    %v162 = vld [vmem:[%s8 + $0xd0] sm:$0xff]
    %v163 = vld [vmem:[%s8 + $0xd8] sm:$0xff]
    %v164 = vld [vmem:[%s8 + $0xe0] sm:$0xff]
    %v165 = vld [vmem:[%s8 + $0xe8] sm:$0xff]
    %v166 = vld [vmem:[%s8 + $0xf0] sm:$0xff]
    %v167 = vld [vmem:[%s8 + $0xf8] sm:$0xff]
    %v168 = vld [vmem:[%s9] sm:$0x1]
    %v170 = vperm.slane %v168, 0
    %172 = vmatpush.msra.mxu0 %v151
    %173 = vmatpush.msra.mxu0 %v150
    %174 = vmatpush.msra.mxu0 %v149
    %175 = vmatpush.msra.mxu0 %v148
    %176 = vmatpush.msra.mxu0 %v147
    %177 = vmatpush.msra.mxu0 %v146
    %178 = vmatpush.msra.mxu0 %v145
    %179 = vmatpush.msra.mxu0 %v144
    %180 = vmatpush.msra.mxu0 %v143
    %181 = vmatpush.msra.mxu0 %v142
    %182 = vmatpush.msra.mxu0 %v141
    %183 = vmatpush.msra.mxu0 %v140
    %184 = vmatpush.msra.mxu0 %v139
    %185 = vmatpush.msra.mxu0 %v138
    %186 = vmatpush.msra.mxu0 %v137
    %187 = vmatpush.msra.mxu0 %v136
    %188 = vmatmul.f32.gmra.mxu0 %v134
    %v189 = vpop.f32.mrf.mxu0
    %v190 = vadd.f32 %v170, %v189
    %191 = vdwg.mxu0
    %192 = vmatpush.msra.mxu0 %v167
    %193 = vmatpush.msra.mxu0 %v166
    %194 = vmatpush.msra.mxu0 %v165
    %195 = vmatpush.msra.mxu0 %v164
    %196 = vmatpush.msra.mxu0 %v163
    %197 = vmatpush.msra.mxu0 %v162
    %198 = vmatpush.msra.mxu0 %v161
    %199 = vmatpush.msra.mxu0 %v160
    %200 = vmatpush.msra.mxu0 %v159
    %201 = vmatpush.msra.mxu0 %v158
    %202 = vmatpush.msra.mxu0 %v157
    %203 = vmatpush.msra.mxu0 %v156
    %204 = vmatpush.msra.mxu0 %v155
    %205 = vmatpush.msra.mxu0 %v154
    %206 = vmatpush.msra.mxu0 %v153
    %207 = vmatpush.msra.mxu0 %v152
    %208 = vmatmul.f32.gmra.mxu0 %v135
    %v209 = vpop.f32.mrf.mxu0
    %v210 = vadd.f32 %v190, %v209
    %211 = vdwg.mxu0
    %v212 = vxor.u32 %v210, 2147483648
    %v213 = vmul.f32 %v212, 1.442695
    %v214 = vpow.pop %v213
    %v215 = vadd.f32 %v214, 1.0
    %v216 = vrcp.pop %v215
    %v217 = vmul.f32 %v215, %v216
    %v218 = vsub.f32 1.0, %v217
    %v219 = vmul.f32 %v216, %v218
    %v220 = vadd.f32 %v216, %v219
    %vm221 = vweird.f32 %v215
    %vm222 = vweird.f32 %v216
    %vm223 = vmor %vm221, %vm222
    %v224 = vsel %vm223, %v216, %v220
    %v225 = vand.u32 2147483647, %v215
    %vm226 = vcmp.eq.f32.partialorder %v225, 8.507059e+37
    %v227 = vand.u32 %v215, 2147483648
    %v228 = vor.u32 1.1754944e-38, %v227
    %v229 = vsel %vm226, %v228, %v224
    %v230 = vmul.f32 1.0, %v229
    %v231 = vld [vmem:[%s1] sm:$0xff]
    %v232 = vld [vmem:[%s1 + $0x8] sm:$0xff]
    %v233 = vld [vmem:[%s10] sm:$0xff]
    %v234 = vld [vmem:[%s10 + $0x8] sm:$0xff]
    %v235 = vld [vmem:[%s10 + $0x10] sm:$0xff]
    %v236 = vld [vmem:[%s10 + $0x18] sm:$0xff]
    %v237 = vld [vmem:[%s10 + $0x20] sm:$0xff]
    %v238 = vld [vmem:[%s10 + $0x28] sm:$0xff]
    %v239 = vld [vmem:[%s10 + $0x30] sm:$0xff]
    %v240 = vld [vmem:[%s10 + $0x38] sm:$0xff]
    %v241 = vld [vmem:[%s11] sm:$0x3]
    %v243 = vperm.slane %v241, 0
    %v244 = vperm.slane %v241, 1
    %v248 = vsel %vm90, %v231, 0
    %v251 = vsel %vm90, %v232, 0
    %253 = vmatpush.msra.mxu0 0.0
    %254 = vmatpush.msra.mxu0 0.0
    %255 = vmatpush.msra.mxu0 0.0
    %256 = vmatpush.msra.mxu0 0.0
    %257 = vmatpush.msra.mxu0 0.0
    %258 = vmatpush.msra.mxu0 0.0
    %259 = vmatpush.msra.mxu0 0.0
    %260 = vmatpush.msra.mxu0 0.0
    %261 = vmatpush.msra.mxu0 0.0
    %262 = vmatpush.msra.mxu0 0.0
    %263 = vmatpush.msra.mxu0 0.0
    %264 = vmatpush.msra.mxu0 0.0
    %265 = vmatpush.msra.mxu0 %v239
    %266 = vmatpush.msra.mxu0 %v237
    %267 = vmatpush.msra.mxu0 %v235
    %268 = vmatpush.msra.mxu0 %v233
    %269 = vmatmul.f32.gmra.mxu0 %v248
    %v270 = vpop.f32.mrf.mxu0
    %v271 = vadd.f32 %v243, %v270
    %272 = vmatmul.f32.gmra.mxu0 %v251
    %v273 = vpop.f32.mrf.mxu0
    %v274 = vadd.f32 %v243, %v273
    %275 = vdwg.mxu0
    %276 = vmatpush.msra.mxu0 0.0
    %277 = vmatpush.msra.mxu0 0.0
    %278 = vmatpush.msra.mxu0 0.0
    %279 = vmatpush.msra.mxu0 0.0
    %280 = vmatpush.msra.mxu0 0.0
    %281 = vmatpush.msra.mxu0 0.0
    %282 = vmatpush.msra.mxu0 0.0
    %283 = vmatpush.msra.mxu0 0.0
    %284 = vmatpush.msra.mxu0 0.0
    %285 = vmatpush.msra.mxu0 0.0
    %286 = vmatpush.msra.mxu0 0.0
    %287 = vmatpush.msra.mxu0 0.0
    %288 = vmatpush.msra.mxu0 %v240
    %289 = vmatpush.msra.mxu0 %v238
    %290 = vmatpush.msra.mxu0 %v236
    %291 = vmatpush.msra.mxu0 %v234
    %292 = vmatmul.f32.gmra.mxu0 %v248
    %v293 = vpop.f32.mrf.mxu0
    %v294 = vadd.f32 %v244, %v293
    %295 = vmatmul.f32.gmra.mxu0 %v251
    %v296 = vpop.f32.mrf.mxu0
    %v297 = vadd.f32 %v244, %v296
    %298 = vdwg.mxu0
    %v299 = vmax.f32 %v271, 0.0
    %v300 = vmax.f32 %v294, 0.0
    %v301 = vmax.f32 %v274, 0.0
    %v302 = vmax.f32 %v297, 0.0
    %v303 = vld [vmem:[%s12] sm:$0xff]
    %v304 = vld [vmem:[%s12 + $0x8] sm:$0xff]
    %v305 = vld [vmem:[%s12 + $0x10] sm:$0xff]
    %v306 = vld [vmem:[%s12 + $0x18] sm:$0xff]
    %v307 = vld [vmem:[%s12 + $0x20] sm:$0xff]
    %v308 = vld [vmem:[%s12 + $0x28] sm:$0xff]
    %v309 = vld [vmem:[%s12 + $0x30] sm:$0xff]
    %v310 = vld [vmem:[%s12 + $0x38] sm:$0xff]
    %v311 = vld [vmem:[%s12 + $0x40] sm:$0xff]
    %v312 = vld [vmem:[%s12 + $0x48] sm:$0xff]
    %v313 = vld [vmem:[%s12 + $0x50] sm:$0xff]
    %v314 = vld [vmem:[%s12 + $0x58] sm:$0xff]
    %v315 = vld [vmem:[%s12 + $0x60] sm:$0xff]
    %v316 = vld [vmem:[%s12 + $0x68] sm:$0xff]
    %v317 = vld [vmem:[%s12 + $0x70] sm:$0xff]
    %v318 = vld [vmem:[%s12 + $0x78] sm:$0xff]
    %v319 = vld [vmem:[%s12 + $0x80] sm:$0xff]
    %v320 = vld [vmem:[%s12 + $0x88] sm:$0xff]
    %v321 = vld [vmem:[%s12 + $0x90] sm:$0xff]
    %v322 = vld [vmem:[%s12 + $0x98] sm:$0xff]
    %v323 = vld [vmem:[%s12 + $0xa0] sm:$0xff]
    %v324 = vld [vmem:[%s12 + $0xa8] sm:$0xff]
    %v325 = vld [vmem:[%s12 + $0xb0] sm:$0xff]
    %v326 = vld [vmem:[%s12 + $0xb8] sm:$0xff]
    %v327 = vld [vmem:[%s12 + $0xc0] sm:$0xff]
    %v328 = vld [vmem:[%s12 + $0xc8] sm:$0xff]
    %v329 = vld [vmem:[%s12 + $0xd0] sm:$0xff]
    %v330 = vld [vmem:[%s12 + $0xd8] sm:$0xff]
    %v331 = vld [vmem:[%s12 + $0xe0] sm:$0xff]
    %v332 = vld [vmem:[%s12 + $0xe8] sm:$0xff]
    %v333 = vld [vmem:[%s12 + $0xf0] sm:$0xff]
    %v334 = vld [vmem:[%s12 + $0xf8] sm:$0xff]
    %v335 = vld [vmem:[%s13] sm:$0x1]
    %v337 = vperm.slane %v335, 0
    %339 = vmatpush.msra.mxu0 %v318
    %340 = vmatpush.msra.mxu0 %v317
    %341 = vmatpush.msra.mxu0 %v316
    %342 = vmatpush.msra.mxu0 %v315
    %343 = vmatpush.msra.mxu0 %v314
    %344 = vmatpush.msra.mxu0 %v313
    %345 = vmatpush.msra.mxu0 %v312
    %346 = vmatpush.msra.mxu0 %v311
    %347 = vmatpush.msra.mxu0 %v310
    %348 = vmatpush.msra.mxu0 %v309
    %349 = vmatpush.msra.mxu0 %v308
    %350 = vmatpush.msra.mxu0 %v307
    %351 = vmatpush.msra.mxu0 %v306
    %352 = vmatpush.msra.mxu0 %v305
    %353 = vmatpush.msra.mxu0 %v304
    %354 = vmatpush.msra.mxu0 %v303
    %355 = vmatmul.f32.gmra.mxu0 %v299
    %v356 = vpop.f32.mrf.mxu0
    %v357 = vadd.f32 %v337, %v356
    %358 = vmatmul.f32.gmra.mxu0 %v301
    %v359 = vpop.f32.mrf.mxu0
    %v360 = vadd.f32 %v337, %v359
    %361 = vdwg.mxu0
    %362 = vmatpush.msra.mxu0 %v334
    %363 = vmatpush.msra.mxu0 %v333
    %364 = vmatpush.msra.mxu0 %v332
    %365 = vmatpush.msra.mxu0 %v331
    %366 = vmatpush.msra.mxu0 %v330
    %367 = vmatpush.msra.mxu0 %v329
    %368 = vmatpush.msra.mxu0 %v328
    %369 = vmatpush.msra.mxu0 %v327
    %370 = vmatpush.msra.mxu0 %v326
    %371 = vmatpush.msra.mxu0 %v325
    %372 = vmatpush.msra.mxu0 %v324
    %373 = vmatpush.msra.mxu0 %v323
    %374 = vmatpush.msra.mxu0 %v322
    %375 = vmatpush.msra.mxu0 %v321
    %376 = vmatpush.msra.mxu0 %v320
    %377 = vmatpush.msra.mxu0 %v319
    %378 = vmatmul.f32.gmra.mxu0 %v300
    %v379 = vpop.f32.mrf.mxu0
    %v380 = vadd.f32 %v357, %v379
    %381 = vmatmul.f32.gmra.mxu0 %v302
    %v382 = vpop.f32.mrf.mxu0
    %v383 = vadd.f32 %v360, %v382
    %384 = vdwg.mxu0
    %v385 = vxor.u32 %v380, 2147483648
    %v386 = vxor.u32 %v383, 2147483648
    %v387 = vmul.f32 %v385, 1.442695
    %v388 = vpow.pop %v387
    %v389 = vmul.f32 %v386, 1.442695
    %v390 = vpow.pop %v389
    %v391 = vadd.f32 %v388, 1.0
    %v392 = vadd.f32 %v390, 1.0
    %v393 = vrcp.pop %v391
    %v394 = vmul.f32 %v391, %v393
    %v395 = vsub.f32 1.0, %v394
    %v396 = vmul.f32 %v393, %v395
    %v397 = vadd.f32 %v393, %v396
    %vm398 = vweird.f32 %v391
    %vm399 = vweird.f32 %v393
    %vm400 = vmor %vm398, %vm399
    %v401 = vsel %vm400, %v393, %v397
    %v402 = vand.u32 2147483647, %v391
    %vm403 = vcmp.eq.f32.partialorder %v402, 8.507059e+37
    %v404 = vand.u32 %v391, 2147483648
    %v405 = vor.u32 1.1754944e-38, %v404
    %v406 = vsel %vm403, %v405, %v401
    %v407 = vmul.f32 1.0, %v406
    %v408 = vrcp.pop %v392
    %v409 = vmul.f32 %v392, %v408
    %v410 = vsub.f32 1.0, %v409
    %v411 = vmul.f32 %v408, %v410
    %v412 = vadd.f32 %v408, %v411
    %vm413 = vweird.f32 %v392
    %vm414 = vweird.f32 %v408
    %vm415 = vmor %vm413, %vm414
    %v416 = vsel %vm415, %v408, %v412
    %v417 = vand.u32 2147483647, %v392
    %vm418 = vcmp.eq.f32.partialorder %v417, 8.507059e+37
    %v419 = vand.u32 %v392, 2147483648
    %v420 = vor.u32 1.1754944e-38, %v419
    %v421 = vsel %vm418, %v420, %v416
    %v422 = vmul.f32 1.0, %v421
    %v423 = vld [vmem:[%s2] sm:$0x3]
    %v424 = vld [vmem:[%s14] sm:$0xff]
    %v425 = vld [vmem:[%s14 + $0x8] sm:$0xff]
    %v426 = vld [vmem:[%s14 + $0x10] sm:$0xff]
    %v427 = vld [vmem:[%s14 + $0x18] sm:$0xff]
    %v428 = vld [vmem:[%s14 + $0x20] sm:$0xff]
    %v429 = vld [vmem:[%s14 + $0x28] sm:$0xff]
    %v430 = vld [vmem:[%s14 + $0x30] sm:$0xff]
    %v431 = vld [vmem:[%s14 + $0x38] sm:$0xff]
    %v432 = vld [vmem:[%s15] sm:$0x3]
    %v434 = vperm.slane %v432, 0
    %v435 = vperm.slane %v432, 1
    %v439 = vsel %vm90, %v423, 0
    %441 = vmatpush.msra.mxu0 0.0
    %442 = vmatpush.msra.mxu0 0.0
    %443 = vmatpush.msra.mxu0 0.0
    %444 = vmatpush.msra.mxu0 0.0
    %445 = vmatpush.msra.mxu0 0.0
    %446 = vmatpush.msra.mxu0 0.0
    %447 = vmatpush.msra.mxu0 0.0
    %448 = vmatpush.msra.mxu0 0.0
    %449 = vmatpush.msra.mxu0 0.0
    %450 = vmatpush.msra.mxu0 0.0
    %451 = vmatpush.msra.mxu0 0.0
    %452 = vmatpush.msra.mxu0 0.0
    %453 = vmatpush.msra.mxu0 %v430
    %454 = vmatpush.msra.mxu0 %v428
    %455 = vmatpush.msra.mxu0 %v426
    %456 = vmatpush.msra.mxu0 %v424
    %457 = vmatmul.f32.gmra.mxu0 %v439
    %v458 = vpop.f32.mrf.mxu0
    %v459 = vadd.f32 %v434, %v458
    %460 = vdwg.mxu0
    %461 = vmatpush.msra.mxu0 0.0
    %462 = vmatpush.msra.mxu0 0.0
    %463 = vmatpush.msra.mxu0 0.0
    %464 = vmatpush.msra.mxu0 0.0
    %465 = vmatpush.msra.mxu0 0.0
    %466 = vmatpush.msra.mxu0 0.0
    %467 = vmatpush.msra.mxu0 0.0
    %468 = vmatpush.msra.mxu0 0.0
    %469 = vmatpush.msra.mxu0 0.0
    %470 = vmatpush.msra.mxu0 0.0
    %471 = vmatpush.msra.mxu0 0.0
    %472 = vmatpush.msra.mxu0 0.0
    %473 = vmatpush.msra.mxu0 %v431
    %474 = vmatpush.msra.mxu0 %v429
    %475 = vmatpush.msra.mxu0 %v427
    %476 = vmatpush.msra.mxu0 %v425
    %477 = vmatmul.f32.gmra.mxu0 %v439
    %v478 = vpop.f32.mrf.mxu0
    %v479 = vadd.f32 %v435, %v478
    %480 = vdwg.mxu0
    %v481 = vmax.f32 %v459, 0.0
    %v482 = vmax.f32 %v479, 0.0
    %v483 = vld [vmem:[%s16] sm:$0xff]
    %v484 = vld [vmem:[%s16 + $0x8] sm:$0xff]
    %v485 = vld [vmem:[%s16 + $0x10] sm:$0xff]
    %v486 = vld [vmem:[%s16 + $0x18] sm:$0xff]
    %v487 = vld [vmem:[%s16 + $0x20] sm:$0xff]
    %v488 = vld [vmem:[%s16 + $0x28] sm:$0xff]
    %v489 = vld [vmem:[%s16 + $0x30] sm:$0xff]
    %v490 = vld [vmem:[%s16 + $0x38] sm:$0xff]
    %v491 = vld [vmem:[%s16 + $0x40] sm:$0xff]
    %v492 = vld [vmem:[%s16 + $0x48] sm:$0xff]
    %v493 = vld [vmem:[%s16 + $0x50] sm:$0xff]
    %v494 = vld [vmem:[%s16 + $0x58] sm:$0xff]
    %v495 = vld [vmem:[%s16 + $0x60] sm:$0xff]
    %v496 = vld [vmem:[%s16 + $0x68] sm:$0xff]
    %v497 = vld [vmem:[%s16 + $0x70] sm:$0xff]
    %v498 = vld [vmem:[%s16 + $0x78] sm:$0xff]
    %v499 = vld [vmem:[%s16 + $0x80] sm:$0xff]
    %v500 = vld [vmem:[%s16 + $0x88] sm:$0xff]
    %v501 = vld [vmem:[%s16 + $0x90] sm:$0xff]
    %v502 = vld [vmem:[%s16 + $0x98] sm:$0xff]
    %v503 = vld [vmem:[%s16 + $0xa0] sm:$0xff]
    %v504 = vld [vmem:[%s16 + $0xa8] sm:$0xff]
    %v505 = vld [vmem:[%s16 + $0xb0] sm:$0xff]
    %v506 = vld [vmem:[%s16 + $0xb8] sm:$0xff]
    %v507 = vld [vmem:[%s16 + $0xc0] sm:$0xff]
    %v508 = vld [vmem:[%s16 + $0xc8] sm:$0xff]
    %v509 = vld [vmem:[%s16 + $0xd0] sm:$0xff]
    %v510 = vld [vmem:[%s16 + $0xd8] sm:$0xff]
    %v511 = vld [vmem:[%s16 + $0xe0] sm:$0xff]
    %v512 = vld [vmem:[%s16 + $0xe8] sm:$0xff]
    %v513 = vld [vmem:[%s16 + $0xf0] sm:$0xff]
    %v514 = vld [vmem:[%s16 + $0xf8] sm:$0xff]
    %v515 = vld [vmem:[%s17] sm:$0x1]
    %v517 = vperm.slane %v515, 0
    %519 = vmatpush.msra.mxu0 %v498
    %520 = vmatpush.msra.mxu0 %v497
    %521 = vmatpush.msra.mxu0 %v496
    %522 = vmatpush.msra.mxu0 %v495
    %523 = vmatpush.msra.mxu0 %v494
    %524 = vmatpush.msra.mxu0 %v493
    %525 = vmatpush.msra.mxu0 %v492
    %526 = vmatpush.msra.mxu0 %v491
    %527 = vmatpush.msra.mxu0 %v490
    %528 = vmatpush.msra.mxu0 %v489
    %529 = vmatpush.msra.mxu0 %v488
    %530 = vmatpush.msra.mxu0 %v487
    %531 = vmatpush.msra.mxu0 %v486
    %532 = vmatpush.msra.mxu0 %v485
    %533 = vmatpush.msra.mxu0 %v484
    %534 = vmatpush.msra.mxu0 %v483
    %535 = vmatmul.f32.gmra.mxu0 %v481
    %v536 = vpop.f32.mrf.mxu0
    %v537 = vadd.f32 %v517, %v536
    %538 = vdwg.mxu0
    %539 = vmatpush.msra.mxu0 %v514
    %540 = vmatpush.msra.mxu0 %v513
    %541 = vmatpush.msra.mxu0 %v512
    %542 = vmatpush.msra.mxu0 %v511
    %543 = vmatpush.msra.mxu0 %v510
    %544 = vmatpush.msra.mxu0 %v509
    %545 = vmatpush.msra.mxu0 %v508
    %546 = vmatpush.msra.mxu0 %v507
    %547 = vmatpush.msra.mxu0 %v506
    %548 = vmatpush.msra.mxu0 %v505
    %549 = vmatpush.msra.mxu0 %v504
    %550 = vmatpush.msra.mxu0 %v503
    %551 = vmatpush.msra.mxu0 %v502
    %552 = vmatpush.msra.mxu0 %v501
    %553 = vmatpush.msra.mxu0 %v500
    %554 = vmatpush.msra.mxu0 %v499
    %555 = vmatmul.f32.gmra.mxu0 %v482
    %v556 = vpop.f32.mrf.mxu0
    %v557 = vadd.f32 %v537, %v556
    %558 = vdwg.mxu0
    %v559 = vxor.u32 %v557, 2147483648
    %v560 = vmul.f32 %v559, 1.442695
    %v561 = vpow.pop %v560
    %v562 = vadd.f32 %v561, 1.0
    %v563 = vrcp.pop %v562
    %v564 = vmul.f32 %v562, %v563
    %v565 = vsub.f32 1.0, %v564
    %v566 = vmul.f32 %v563, %v565
    %v567 = vadd.f32 %v563, %v566
    %vm568 = vweird.f32 %v562
    %vm569 = vweird.f32 %v563
    %vm570 = vmor %vm568, %vm569
    %v571 = vsel %vm570, %v563, %v567
    %v572 = vand.u32 2147483647, %v562
    %vm573 = vcmp.eq.f32.partialorder %v572, 8.507059e+37
    %v574 = vand.u32 %v562, 2147483648
    %v575 = vor.u32 1.1754944e-38, %v574
    %v576 = vsel %vm573, %v575, %v571
    %v577 = vmul.f32 1.0, %v576
    %v578 = vld [vmem:[%s3] sm:$0xff]
    %v579 = vld [vmem:[%s3 + $0x8] sm:$0xff]
    %v580 = vld [vmem:[%s18] sm:$0xff]
    %v581 = vld [vmem:[%s18 + $0x8] sm:$0xff]
    %v582 = vld [vmem:[%s18 + $0x10] sm:$0xff]
    %v583 = vld [vmem:[%s18 + $0x18] sm:$0xff]
    %v584 = vld [vmem:[%s18 + $0x20] sm:$0xff]
    %v585 = vld [vmem:[%s18 + $0x28] sm:$0xff]
    %v586 = vld [vmem:[%s18 + $0x30] sm:$0xff]
    %v587 = vld [vmem:[%s18 + $0x38] sm:$0xff]
    %v588 = vld [vmem:[%s19] sm:$0x3]
    %v590 = vperm.slane %v588, 0
    %v591 = vperm.slane %v588, 1
    %v595 = vsel %vm90, %v578, 0
    %v598 = vsel %vm90, %v579, 0
    %600 = vmatpush.msra.mxu0 0.0
    %601 = vmatpush.msra.mxu0 0.0
    %602 = vmatpush.msra.mxu0 0.0
    %603 = vmatpush.msra.mxu0 0.0
    %604 = vmatpush.msra.mxu0 0.0
    %605 = vmatpush.msra.mxu0 0.0
    %606 = vmatpush.msra.mxu0 0.0
    %607 = vmatpush.msra.mxu0 0.0
    %608 = vmatpush.msra.mxu0 0.0
    %609 = vmatpush.msra.mxu0 0.0
    %610 = vmatpush.msra.mxu0 0.0
    %611 = vmatpush.msra.mxu0 0.0
    %612 = vmatpush.msra.mxu0 %v586
    %613 = vmatpush.msra.mxu0 %v584
    %614 = vmatpush.msra.mxu0 %v582
    %615 = vmatpush.msra.mxu0 %v580
    %616 = vmatmul.f32.gmra.mxu0 %v595
    %v617 = vpop.f32.mrf.mxu0
    %v618 = vadd.f32 %v590, %v617
    %619 = vmatmul.f32.gmra.mxu0 %v598
    %v620 = vpop.f32.mrf.mxu0
    %v621 = vadd.f32 %v590, %v620
    %622 = vdwg.mxu0
    %623 = vmatpush.msra.mxu0 0.0
    %624 = vmatpush.msra.mxu0 0.0
    %625 = vmatpush.msra.mxu0 0.0
    %626 = vmatpush.msra.mxu0 0.0
    %627 = vmatpush.msra.mxu0 0.0
    %628 = vmatpush.msra.mxu0 0.0
    %629 = vmatpush.msra.mxu0 0.0
    %630 = vmatpush.msra.mxu0 0.0
    %631 = vmatpush.msra.mxu0 0.0
    %632 = vmatpush.msra.mxu0 0.0
    %633 = vmatpush.msra.mxu0 0.0
    %634 = vmatpush.msra.mxu0 0.0
    %635 = vmatpush.msra.mxu0 %v587
    %636 = vmatpush.msra.mxu0 %v585
    %637 = vmatpush.msra.mxu0 %v583
    %638 = vmatpush.msra.mxu0 %v581
    %639 = vmatmul.f32.gmra.mxu0 %v595
    %v640 = vpop.f32.mrf.mxu0
    %v641 = vadd.f32 %v591, %v640
    %642 = vmatmul.f32.gmra.mxu0 %v598
    %v643 = vpop.f32.mrf.mxu0
    %v644 = vadd.f32 %v591, %v643
    %645 = vdwg.mxu0
    %v646 = vmax.f32 %v618, 0.0
    %v647 = vmax.f32 %v641, 0.0
    %v648 = vmax.f32 %v621, 0.0
    %v649 = vmax.f32 %v644, 0.0
    %v650 = vld [vmem:[%s20] sm:$0xff]
    %v651 = vld [vmem:[%s20 + $0x8] sm:$0xff]
    %v652 = vld [vmem:[%s20 + $0x10] sm:$0xff]
    %v653 = vld [vmem:[%s20 + $0x18] sm:$0xff]
    %v654 = vld [vmem:[%s20 + $0x20] sm:$0xff]
    %v655 = vld [vmem:[%s20 + $0x28] sm:$0xff]
    %v656 = vld [vmem:[%s20 + $0x30] sm:$0xff]
    %v657 = vld [vmem:[%s20 + $0x38] sm:$0xff]
    %v658 = vld [vmem:[%s20 + $0x40] sm:$0xff]
    %v659 = vld [vmem:[%s20 + $0x48] sm:$0xff]
    %v660 = vld [vmem:[%s20 + $0x50] sm:$0xff]
    %v661 = vld [vmem:[%s20 + $0x58] sm:$0xff]
    %v662 = vld [vmem:[%s20 + $0x60] sm:$0xff]
    %v663 = vld [vmem:[%s20 + $0x68] sm:$0xff]
    %v664 = vld [vmem:[%s20 + $0x70] sm:$0xff]
    %v665 = vld [vmem:[%s20 + $0x78] sm:$0xff]
    %v666 = vld [vmem:[%s20 + $0x80] sm:$0xff]
    %v667 = vld [vmem:[%s20 + $0x88] sm:$0xff]
    %v668 = vld [vmem:[%s20 + $0x90] sm:$0xff]
    %v669 = vld [vmem:[%s20 + $0x98] sm:$0xff]
    %v670 = vld [vmem:[%s20 + $0xa0] sm:$0xff]
    %v671 = vld [vmem:[%s20 + $0xa8] sm:$0xff]
    %v672 = vld [vmem:[%s20 + $0xb0] sm:$0xff]
    %v673 = vld [vmem:[%s20 + $0xb8] sm:$0xff]
    %v674 = vld [vmem:[%s20 + $0xc0] sm:$0xff]
    %v675 = vld [vmem:[%s20 + $0xc8] sm:$0xff]
    %v676 = vld [vmem:[%s20 + $0xd0] sm:$0xff]
    %v677 = vld [vmem:[%s20 + $0xd8] sm:$0xff]
    %v678 = vld [vmem:[%s20 + $0xe0] sm:$0xff]
    %v679 = vld [vmem:[%s20 + $0xe8] sm:$0xff]
    %v680 = vld [vmem:[%s20 + $0xf0] sm:$0xff]
    %v681 = vld [vmem:[%s20 + $0xf8] sm:$0xff]
    %v682 = vld [vmem:[%s21] sm:$0x1]
    %v684 = vperm.slane %v682, 0
    %686 = vmatpush.msra.mxu0 %v665
    %687 = vmatpush.msra.mxu0 %v664
    %688 = vmatpush.msra.mxu0 %v663
    %689 = vmatpush.msra.mxu0 %v662
    %690 = vmatpush.msra.mxu0 %v661
    %691 = vmatpush.msra.mxu0 %v660
    %692 = vmatpush.msra.mxu0 %v659
    %693 = vmatpush.msra.mxu0 %v658
    %694 = vmatpush.msra.mxu0 %v657
    %695 = vmatpush.msra.mxu0 %v656
    %696 = vmatpush.msra.mxu0 %v655
    %697 = vmatpush.msra.mxu0 %v654
    %698 = vmatpush.msra.mxu0 %v653
    %699 = vmatpush.msra.mxu0 %v652
    %700 = vmatpush.msra.mxu0 %v651
    %701 = vmatpush.msra.mxu0 %v650
    %702 = vmatmul.f32.gmra.mxu0 %v646
    %v703 = vpop.f32.mrf.mxu0
    %v704 = vadd.f32 %v684, %v703
    %705 = vmatmul.f32.gmra.mxu0 %v648
    %v706 = vpop.f32.mrf.mxu0
    %v707 = vadd.f32 %v684, %v706
    %708 = vdwg.mxu0
    %709 = vmatpush.msra.mxu0 %v681
    %710 = vmatpush.msra.mxu0 %v680
    %711 = vmatpush.msra.mxu0 %v679
    %712 = vmatpush.msra.mxu0 %v678
    %713 = vmatpush.msra.mxu0 %v677
    %714 = vmatpush.msra.mxu0 %v676
    %715 = vmatpush.msra.mxu0 %v675
    %716 = vmatpush.msra.mxu0 %v674
    %717 = vmatpush.msra.mxu0 %v673
    %718 = vmatpush.msra.mxu0 %v672
    %719 = vmatpush.msra.mxu0 %v671
    %720 = vmatpush.msra.mxu0 %v670
    %721 = vmatpush.msra.mxu0 %v669
    %722 = vmatpush.msra.mxu0 %v668
    %723 = vmatpush.msra.mxu0 %v667
    %724 = vmatpush.msra.mxu0 %v666
    %725 = vmatmul.f32.gmra.mxu0 %v647
    %v726 = vpop.f32.mrf.mxu0
    %v727 = vadd.f32 %v704, %v726
    %728 = vmatmul.f32.gmra.mxu0 %v649
    %v729 = vpop.f32.mrf.mxu0
    %v730 = vadd.f32 %v707, %v729
    %731 = vdwg.mxu0
    %v732 = vxor.u32 %v727, 2147483648
    %v733 = vxor.u32 %v730, 2147483648
    %v734 = vmul.f32 %v732, 1.442695
    %v735 = vpow.pop %v734
    %v736 = vmul.f32 %v733, 1.442695
    %v737 = vpow.pop %v736
    %v738 = vadd.f32 %v735, 1.0
    %v739 = vadd.f32 %v737, 1.0
    %v740 = vrcp.pop %v738
    %v741 = vmul.f32 %v738, %v740
    %v742 = vsub.f32 1.0, %v741
    %v743 = vmul.f32 %v740, %v742
    %v744 = vadd.f32 %v740, %v743
    %vm745 = vweird.f32 %v738
    %vm746 = vweird.f32 %v740
    %vm747 = vmor %vm745, %vm746
    %v748 = vsel %vm747, %v740, %v744
    %v749 = vand.u32 2147483647, %v738
    %vm750 = vcmp.eq.f32.partialorder %v749, 8.507059e+37
    %v751 = vand.u32 %v738, 2147483648
    %v752 = vor.u32 1.1754944e-38, %v751
    %v753 = vsel %vm750, %v752, %v748
    %v754 = vmul.f32 1.0, %v753
    %v755 = vrcp.pop %v739
    %v756 = vmul.f32 %v739, %v755
    %v757 = vsub.f32 1.0, %v756
    %v758 = vmul.f32 %v755, %v757
    %v759 = vadd.f32 %v755, %v758
    %vm760 = vweird.f32 %v739
    %vm761 = vweird.f32 %v755
    %vm762 = vmor %vm760, %vm761
    %v763 = vsel %vm762, %v755, %v759
    %v764 = vand.u32 2147483647, %v739
    %vm765 = vcmp.eq.f32.partialorder %v764, 8.507059e+37
    %v766 = vand.u32 %v739, 2147483648
    %v767 = vor.u32 1.1754944e-38, %v766
    %v768 = vsel %vm765, %v767, %v763
    %v769 = vmul.f32 1.0, %v768
    %v770 = vld [vmem:[%s4] sm:$0x3]
    %772 = vrot.lane.b32.xlu0 %v770, 32
    %v773 = vpop.permute.xlu0 %772
    %v775 = vmul.f32 %v230, %v773
    %777 = vrot.lane.b32.xlu0 %v775, 96
    %v778 = vpop.permute.xlu0 %777
    %v780 = vadd.f32 %v230, %v778
    %vm781 = vcmask 254976
    %782 = vst.msk [vmem:[%s22] sm:$0x3] %vm781, %v780
    %v783 = vld [vmem:[%s5] sm:$0xff]
    %v784 = vld [vmem:[%s5 + $0x8] sm:$0xff]
    %787 = vrot.lane.b32.xlu0 %v783, 32
    %v788 = vpop.permute.xlu0 %787
    %789 = vrot.lane.b32.xlu0 %v784, 32
    %v790 = vpop.permute.xlu0 %789
    %v793 = vmul.f32 %v407, %v788
    %v794 = vmul.f32 %v422, %v790
    %797 = vrot.lane.b32.xlu0 %v793, 96
    %v798 = vpop.permute.xlu0 %797
    %799 = vrot.lane.b32.xlu0 %v794, 96
    %v800 = vpop.permute.xlu0 %799
    %v803 = vadd.f32 %v407, %v798
    %v804 = vadd.f32 %v422, %v800
    %805 = vst.msk [vmem:[%s23] sm:$0xff] %vm90, %v803
    %806 = vst.msk [vmem:[%s23 + $0x8] sm:$0xff] %vm90, %v804
    %v807 = vand.u32 2147483647, %v230
    %v808 = vand.u32 2147483647, %v407
    %v809 = vand.u32 2147483647, %v422
    %v810 = vand.u32 2147483647, %v577
    %v811 = vand.u32 2147483647, %v754
    %v812 = vand.u32 2147483647, %v769
    %v813 = vsub.f32 %v230, %v577
    %v814 = vmul.f32 %v813, %v813
    %v815 = vmul.f32 %v807, %v807
    %817 = vrot.lane.b32.xlu0 %v815, 96
    %v818 = vpop.permute.xlu0 %817
    %v820 = vadd.f32 %v814, %v818
    %v821 = vmul.f32 %v820, 0.5
    %v822 = vadd.f32 %v810, 1e-08
    %v823 = vmul.f32 %v822, %v822
    %825 = vrot.lane.b32.xlu0 %v823, 96
    %v826 = vpop.permute.xlu0 %825
    %v828 = vmul.f32 %v821, %v826
    %v829 = vadd.f32 %v810, 1e-16
    %v830 = vadd.f32 %v807, 1e-16
    %v831 = vrcp.pop %v830
    %v832 = vmul.f32 %v830, %v831
    %v833 = vsub.f32 1.0, %v832
    %v834 = vmul.f32 %v831, %v833
    %v835 = vadd.f32 %v831, %v834
    %vm836 = vweird.f32 %v830
    %vm837 = vweird.f32 %v831
    %vm838 = vmor %vm836, %vm837
    %v839 = vsel %vm838, %v831, %v835
    %v840 = vand.u32 2147483647, %v830
    %vm841 = vcmp.eq.f32.partialorder %v840, 8.507059e+37
    %v842 = vand.u32 %v830, 2147483648
    %v843 = vor.u32 1.1754944e-38, %v842
    %v844 = vsel %vm841, %v843, %v839
    %v845 = vmul.f32 %v829, %v844
    %v846 = vlog2.pop %v845
    %v847 = vmul.f32 %v846, 0.6931472
    %849 = vrot.lane.b32.xlu0 %v847, 96
    %v850 = vpop.permute.xlu0 %849
    %v852 = vadd.f32 %v828, %v850
    %v853 = vsel %vm781, %v852, 0.0
    %854 = vadd.xlane.f32.xlu0 %v853
    %v855 = vpop.xlane.xlu0 %854
    %v856 = vrot.slane %v855, 4
    %v857 = vadd.f32 %v855, %v856
    %v858 = vrot.slane %v857, 2
    %v859 = vadd.f32 %v857, %v858
    %v860 = vrot.slane %v859, 1
    %v861 = vadd.f32 %v859, %v860
    %s862 = vtos %v861
    %v863 = vrcp.pop 64.0
    %v864 = vmul.f32 64.0, %v863
    %v865 = vsub.f32 1.0, %v864
    %v866 = vmul.f32 %v863, %v865
    %v867 = vadd.f32 %v863, %v866
    %vm868 = vweird.f32 %v863
    %v869 = vsel %vm868, %v863, %v867
    %s870 = vtos %v869
    %s871 = smul.f32 %s862, %s870
    %v872 = vsub.f32 %v407, %v754
    %v873 = vsub.f32 %v422, %v769
    %v874 = vmul.f32 %v872, %v872
    %v875 = vmul.f32 %v873, %v873
    %v876 = vmul.f32 %v808, %v808
    %v877 = vmul.f32 %v809, %v809
    %880 = vrot.lane.b32.xlu0 %v876, 96
    %v881 = vpop.permute.xlu0 %880
    %882 = vrot.lane.b32.xlu0 %v877, 96
    %v883 = vpop.permute.xlu0 %882
    %v886 = vadd.f32 %v874, %v881
    %v887 = vadd.f32 %v875, %v883
    %v888 = vmul.f32 %v886, 0.5
    %v889 = vmul.f32 %v887, 0.5
    %v890 = vadd.f32 %v811, 1e-08
    %v891 = vadd.f32 %v812, 1e-08
    %v892 = vmul.f32 %v890, %v890
    %v893 = vmul.f32 %v891, %v891
    %896 = vrot.lane.b32.xlu0 %v892, 96
    %v897 = vpop.permute.xlu0 %896
    %898 = vrot.lane.b32.xlu0 %v893, 96
    %v899 = vpop.permute.xlu0 %898
    %v902 = vmul.f32 %v888, %v897
    %v903 = vmul.f32 %v889, %v899
    %v904 = vadd.f32 %v811, 1e-16
    %v905 = vadd.f32 %v812, 1e-16
    %v906 = vadd.f32 %v808, 1e-16
    %v907 = vadd.f32 %v809, 1e-16
    %v908 = vrcp.pop %v906
    %v909 = vmul.f32 %v906, %v908
    %v910 = vsub.f32 1.0, %v909
    %v911 = vmul.f32 %v908, %v910
    %v912 = vadd.f32 %v908, %v911
    %vm913 = vweird.f32 %v906
    %vm914 = vweird.f32 %v908
    %vm915 = vmor %vm913, %vm914
    %v916 = vsel %vm915, %v908, %v912
    %v917 = vand.u32 2147483647, %v906
    %vm918 = vcmp.eq.f32.partialorder %v917, 8.507059e+37
    %v919 = vand.u32 %v906, 2147483648
    %v920 = vor.u32 1.1754944e-38, %v919
    %v921 = vsel %vm918, %v920, %v916
    %v922 = vmul.f32 %v904, %v921
    %v923 = vrcp.pop %v907
    %v924 = vmul.f32 %v907, %v923
    %v925 = vsub.f32 1.0, %v924
    %v926 = vmul.f32 %v923, %v925
    %v927 = vadd.f32 %v923, %v926
    %vm928 = vweird.f32 %v907
    %vm929 = vweird.f32 %v923
    %vm930 = vmor %vm928, %vm929
    %v931 = vsel %vm930, %v923, %v927
    %v932 = vand.u32 2147483647, %v907
    %vm933 = vcmp.eq.f32.partialorder %v932, 8.507059e+37
    %v934 = vand.u32 %v907, 2147483648
    %v935 = vor.u32 1.1754944e-38, %v934
    %v936 = vsel %vm933, %v935, %v931
    %v937 = vmul.f32 %v905, %v936
    %v938 = vlog2.pop %v922
    %v939 = vmul.f32 %v938, 0.6931472
    %v940 = vlog2.pop %v937
    %v941 = vmul.f32 %v940, 0.6931472
    %944 = vrot.lane.b32.xlu0 %v939, 96
    %v945 = vpop.permute.xlu0 %944
    %946 = vrot.lane.b32.xlu0 %v941, 96
    %v947 = vpop.permute.xlu0 %946
    %v950 = vadd.f32 %v902, %v945
    %v951 = vadd.f32 %v903, %v947
    %v952 = vsel %vm90, %v950, 0.0
    %v953 = vsel %vm90, %v951, 0.0
    %v954 = vadd.f32 %v952, %v953
    %955 = vadd.xlane.f32.xlu0 %v954
    %v956 = vpop.xlane.xlu0 %955
    %v957 = vrot.slane %v956, 4
    %v958 = vadd.f32 %v956, %v957
    %v959 = vrot.slane %v958, 2
    %v960 = vadd.f32 %v958, %v959
    %v961 = vrot.slane %v960, 1
    %v962 = vadd.f32 %v960, %v961
    %s963 = vtos %v962
    %v964 = vrcp.pop 512.0
    %v965 = vmul.f32 512.0, %v964
    %v966 = vsub.f32 1.0, %v965
    %v967 = vmul.f32 %v964, %v966
    %v968 = vadd.f32 %v964, %v967
    %vm969 = vweird.f32 %v964
    %v970 = vsel %vm969, %v964, %v968
    %s971 = vtos %v970
    %s972 = smul.f32 %s963, %s971
    %s973 = sadd.f32 %s871, %s972
    %v974 = vmul.f32 %v577, %v577
    %v975 = vmul.f32 %v810, %v810
    %977 = vrot.lane.b32.xlu0 %v975, 96
    %v978 = vpop.permute.xlu0 %977
    %v980 = vadd.f32 %v974, %v978
    %v981 = vmul.f32 %v980, 0.5
    %v982 = vrcp.pop %v829
    %v983 = vmul.f32 %v829, %v982
    %v984 = vsub.f32 1.0, %v983
    %v985 = vmul.f32 %v982, %v984
    %v986 = vadd.f32 %v982, %v985
    %vm987 = vweird.f32 %v829
    %vm988 = vweird.f32 %v982
    %vm989 = vmor %vm987, %vm988
    %v990 = vsel %vm989, %v982, %v986
    %v991 = vand.u32 2147483647, %v829
    %vm992 = vcmp.eq.f32.partialorder %v991, 8.507059e+37
    %v993 = vand.u32 %v829, 2147483648
    %v994 = vor.u32 1.1754944e-38, %v993
    %v995 = vsel %vm992, %v994, %v990
    %v996 = vmul.f32 1.0, %v995
    %v997 = vlog2.pop %v996
    %v998 = vmul.f32 %v997, 0.6931472
    %1000 = vrot.lane.b32.xlu0 %v998, 96
    %v1001 = vpop.permute.xlu0 %1000
    %v1003 = vadd.f32 %v981, %v1001
    %v1004 = vsel %vm781, %v1003, 0.0
    %1005 = vadd.xlane.f32.xlu0 %v1004
    %v1006 = vpop.xlane.xlu0 %1005
    %v1007 = vrot.slane %v1006, 4
    %v1008 = vadd.f32 %v1006, %v1007
    %v1009 = vrot.slane %v1008, 2
    %v1010 = vadd.f32 %v1008, %v1009
    %v1011 = vrot.slane %v1010, 1
    %v1012 = vadd.f32 %v1010, %v1011
    %s1013 = vtos %v1012
    %v1014 = vrcp.pop 64.0
    %v1015 = vmul.f32 64.0, %v1014
    %v1016 = vsub.f32 1.0, %v1015
    %v1017 = vmul.f32 %v1014, %v1016
    %v1018 = vadd.f32 %v1014, %v1017
    %vm1019 = vweird.f32 %v1014
    %v1020 = vsel %vm1019, %v1014, %v1018
    %s1021 = vtos %v1020
    %s1022 = smul.f32 %s1013, %s1021
    %s1023 = sadd.f32 %s973, %s1022
    %v1024 = vmul.f32 %v754, %v754
    %v1025 = vmul.f32 %v769, %v769
    %v1026 = vmul.f32 %v811, %v811
    %v1027 = vmul.f32 %v812, %v812
    %1030 = vrot.lane.b32.xlu0 %v1026, 96
    %v1031 = vpop.permute.xlu0 %1030
    %1032 = vrot.lane.b32.xlu0 %v1027, 96
    %v1033 = vpop.permute.xlu0 %1032
    %v1036 = vadd.f32 %v1024, %v1031
    %v1037 = vadd.f32 %v1025, %v1033
    %v1038 = vmul.f32 %v1036, 0.5
    %v1039 = vmul.f32 %v1037, 0.5
    %v1040 = vrcp.pop %v904
    %v1041 = vmul.f32 %v904, %v1040
    %v1042 = vsub.f32 1.0, %v1041
    %v1043 = vmul.f32 %v1040, %v1042
    %v1044 = vadd.f32 %v1040, %v1043
    %vm1045 = vweird.f32 %v904
    %vm1046 = vweird.f32 %v1040
    %vm1047 = vmor %vm1045, %vm1046
    %v1048 = vsel %vm1047, %v1040, %v1044
    %v1049 = vand.u32 2147483647, %v904
    %vm1050 = vcmp.eq.f32.partialorder %v1049, 8.507059e+37
    %v1051 = vand.u32 %v904, 2147483648
    %v1052 = vor.u32 1.1754944e-38, %v1051
    %v1053 = vsel %vm1050, %v1052, %v1048
    %v1054 = vmul.f32 1.0, %v1053
    %v1055 = vrcp.pop %v905
    %v1056 = vmul.f32 %v905, %v1055
    %v1057 = vsub.f32 1.0, %v1056
    %v1058 = vmul.f32 %v1055, %v1057
    %v1059 = vadd.f32 %v1055, %v1058
    %vm1060 = vweird.f32 %v905
    %vm1061 = vweird.f32 %v1055
    %vm1062 = vmor %vm1060, %vm1061
    %v1063 = vsel %vm1062, %v1055, %v1059
    %v1064 = vand.u32 2147483647, %v905
    %vm1065 = vcmp.eq.f32.partialorder %v1064, 8.507059e+37
    %v1066 = vand.u32 %v905, 2147483648
    %v1067 = vor.u32 1.1754944e-38, %v1066
    %v1068 = vsel %vm1065, %v1067, %v1063
    %v1069 = vmul.f32 1.0, %v1068
    %v1070 = vlog2.pop %v1054
    %v1071 = vmul.f32 %v1070, 0.6931472
    %v1072 = vlog2.pop %v1069
    %v1073 = vmul.f32 %v1072, 0.6931472
    %1076 = vrot.lane.b32.xlu0 %v1071, 96
    %v1077 = vpop.permute.xlu0 %1076
    %1078 = vrot.lane.b32.xlu0 %v1073, 96
    %v1079 = vpop.permute.xlu0 %1078
    %v1082 = vadd.f32 %v1038, %v1077
    %v1083 = vadd.f32 %v1039, %v1079
    %v1084 = vsel %vm90, %v1082, 0.0
    %v1085 = vsel %vm90, %v1083, 0.0
    %v1086 = vadd.f32 %v1084, %v1085
    %1087 = vadd.xlane.f32.xlu0 %v1086
    %v1088 = vpop.xlane.xlu0 %1087
    %v1089 = vrot.slane %v1088, 4
    %v1090 = vadd.f32 %v1088, %v1089
    %v1091 = vrot.slane %v1090, 2
    %v1092 = vadd.f32 %v1090, %v1091
    %v1093 = vrot.slane %v1092, 1
    %v1094 = vadd.f32 %v1092, %v1093
    %s1095 = vtos %v1094
    %v1096 = vrcp.pop 512.0
    %v1097 = vmul.f32 512.0, %v1096
    %v1098 = vsub.f32 1.0, %v1097
    %v1099 = vmul.f32 %v1096, %v1098
    %v1100 = vadd.f32 %v1096, %v1099
    %vm1101 = vweird.f32 %v1096
    %v1102 = vsel %vm1101, %v1096, %v1100
    %s1103 = vtos %v1102
    %s1104 = smul.f32 %s1095, %s1103
    %s1105 = sadd.f32 %s1023, %s1104
    %s1106 = scalar_lea.smem [#allocation2], 0
    %1107 = sst [smem:[%s1106]] %s1105
    // Predicated region
    $region90: #{vae_tower_forward.3} parent=1 // pred_check
      _
    $region91: #{vae_tower_forward.3} parent=1 // pred_check_branch
      %1109 = sbr.rel (0) target = $region93
    $region92: #{vae_tower_forward.3} parent=1 // pred_region
      _
    $region93: #{vae_tower_forward.3} parent=1 // pred_fallthru
      _
    // Predicated region
    $region94: #{vae_tower_forward.3} parent=1 // pred_check
      _
    $region95: #{vae_tower_forward.3} parent=1 // pred_check_branch
      %1111 = sbr.rel (0) target = $region97
    $region96: #{vae_tower_forward.3} parent=1 // pred_region
      _
    $region97: #{vae_tower_forward.3} parent=1 // pred_fallthru
      _
    // Predicated region
    $region98: #{vae_tower_forward.3} parent=1 // pred_check
      _
    $region99: #{vae_tower_forward.3} parent=1 // pred_check_branch
      %1113 = sbr.rel (0) target = $region101
    $region100: #{vae_tower_forward.3} parent=1 // pred_region
      %1115 = vsyncadd [#allocation3], 0
      %s1117 = sshll.u32 %s24, 4
      %s1118 = int_to_ptr.hbm [resolvable:$true] %s1117
      %1120 = dma.smem_to_hbm [#allocation2], 16, %s1118, [#allocation3]
    $region101: #{vae_tower_forward.3} parent=1 // pred_fallthru
      _
    // Predicated region
    $region102: #{vae_tower_forward.3} parent=1 // pred_check
      _
    $region103: #{vae_tower_forward.3} parent=1 // pred_check_branch
      %1122 = sbr.rel (0) target = $region105
    $region104: #{vae_tower_forward.3} parent=1 // pred_region
      _
    $region105: #{vae_tower_forward.3} parent=1 // pred_fallthru
      _
    // Predicated region
    $region106: #{vae_tower_forward.3} parent=1 // pred_check
      _
    $region107: #{vae_tower_forward.3} parent=1 // pred_check_branch
      %1124 = sbr.rel (0) target = $region109
    $region108: #{vae_tower_forward.3} parent=1 // pred_region
      _
    $region109: #{vae_tower_forward.3} parent=1 // pred_fallthru
      _
    // Predicated region
    $region110: #{vae_tower_forward.3} parent=1 // pred_check
      _
    $region111: #{vae_tower_forward.3} parent=1 // pred_check_branch
      %1126 = sbr.rel (0) target = $region113
    $region112: #{vae_tower_forward.3} parent=1 // pred_region
      %1128 = dma.done [#allocation3], 16
    $region113: #{vae_tower_forward.3} parent=1 // pred_fallthru
      _
    %1129 = sfence
    %1130 = vsyncpa [#allocation3], 1

</llo_original>
